<compile_context>
chip_gen: v7x
topology: tpu7x:2x2x1
jax: 0.10.0
libtpu: 0.0.40
codegen_flags: <defaults>
</compile_context>

<pallas_src>
import jax
import jax.numpy as jnp
from jax import lax
from jax.experimental import pallas as pl
from jax.experimental.pallas import tpu as pltpu


_LANE = 128
_TM_MAX = 512


def _round_up(x, m):
    return (x + m - 1) // m * m


def _ceil_div(a, b):
    return -(-a // b)


# ----------------------------- Pallas kernels ------------------------------

def _conv13_kernel(x_ref, w_ref, shift_ref, y1_ref, y3_ref):
    """One matmul against the fused [W1*s1 | W3] weights; dual epilogue.

    y1 = relu(acc[:, :Cp] + shift[:, :Cp])   (conv1 + folded BN1 + ReLU)
    y3 =      acc[:, Cp:] + shift[:, Cp:]    (conv3 shortcut + bias)
    """
    acc = jnp.dot(x_ref[...], w_ref[...], preferred_element_type=jnp.float32)
    y = acc + shift_ref[...]
    cp = y1_ref.shape[-1]
    y1_ref[...] = jnp.maximum(y[:, :cp], 0.0).astype(y1_ref.dtype)
    y3_ref[...] = y[:, cp:].astype(y3_ref.dtype)


def _conv2_kernel(x_ref, w_ref, shift_ref, res_ref, o_ref):
    """out = relu((x @ w2*s2) + shift + residual)  (conv2 + BN2 + add + ReLU)."""
    acc = jnp.dot(x_ref[...], w_ref[...], preferred_element_type=jnp.float32)
    y = acc + shift_ref[...] + res_ref[...].astype(jnp.float32)
    o_ref[...] = jnp.maximum(y, 0.0).astype(o_ref.dtype)


# --------------------------- tiling / pallas_call ---------------------------

def _tiling(m):
    """Row tile TM (multiple of 16) and grid length; >= 2 grid steps when possible."""
    tm = min(_TM_MAX, _round_up(m, 16))
    if 16 < m <= 2 * _TM_MAX:
        tm = min(tm, _round_up(_ceil_div(m, 2), 16))   # two+ tiles for v7x megacore
    tm = max(tm, 16)
    return tm, _ceil_div(m, tm)


def _vmem_limit(nbytes):
    # headroom for compiler scratch; never request >= 32 MiB (v7x TC VMEM = 64 MiB)
    return min(32 * 1024 * 1024, max(2 * nbytes, 4 * 1024 * 1024))


def fused_conv13(cols, w13, shift13, cp):
    """conv1(+BN+ReLU) and conv3(+bias) fused into one matmul, dual bf16 outputs.

    cols:    (M, K)      bf16  im2col patch matrix of the 3x3-s2 window
    w13:     (K, 2*cp)   bf16  [W1 * bn1_scale | W3] (W3 at centre-tap rows)
    shift13: (1, 2*cp)   f32   [bn1 shift | conv3 bias]
    Returns  y1, y3 each (M, cp) bf16 (channels >= Cout are exact zeros).
    """
    M, K = cols.shape
    two_cp = w13.shape[1]
    tm, gm = _tiling(M)

    vmem = (2 * tm * K * 2            # cols tiles (double-buffered, bf16)
            + 2 * K * two_cp * 2      # resident weights
            + 2 * two_cp * 4          # shift vector
            + 2 * 2 * tm * cp * 2)    # two bf16 output tiles, double-buffered
    cost = pl.CostEstimate(
        flops=2 * M * K * two_cp, transcendentals=0,
        bytes_accessed=M * K * 2 + K * two_cp * 2 + two_cp * 4 + 2 * M * cp * 2)

    return pl.pallas_call(
        _conv13_kernel,
        out_shape=(jax.ShapeDtypeStruct((M, cp), jnp.bfloat16),
                   jax.ShapeDtypeStruct((M, cp), jnp.bfloat16)),
        grid=(gm,),
        in_specs=[pl.BlockSpec((tm, K), lambda i: (i, 0)),
                  pl.BlockSpec((K, two_cp), lambda i: (0, 0)),
                  pl.BlockSpec((1, two_cp), lambda i: (0, 0))],
        out_specs=(pl.BlockSpec((tm, cp), lambda i: (i, 0)),
                   pl.BlockSpec((tm, cp), lambda i: (i, 0))),
        compiler_params=pltpu.CompilerParams(
            dimension_semantics=("parallel",),
            vmem_limit_bytes=_vmem_limit(vmem)),
        cost_estimate=cost,
    )(cols, w13, shift13)


def fused_conv2(cols, w2p, shift2, residual):
    """conv2 + folded BN2 + residual add + ReLU, single f32 output.

    cols:     (M, K)    bf16  im2col of the lane-padded y1
    w2p:      (K, cp)   bf16  W2 * bn2_scale scattered to the padded channel rows
    shift2:   (1, cp)   f32
    residual: (M, cp)   bf16  conv3 shortcut from call 1
    """
    M, K = cols.shape
    cp = w2p.shape[1]
    tm, gm = _tiling(M)

    vmem = (2 * tm * K * 2 + 2 * K * cp * 2 + 2 * cp * 4
            + 2 * tm * cp * 2          # residual tiles (bf16)
            + 2 * tm * cp * 4)         # f32 output tiles
    cost = pl.CostEstimate(
        flops=2 * M * K * cp, transcendentals=0,
        bytes_accessed=M * K * 2 + K * cp * 2 + cp * 4 + M * cp * 2 + M * cp * 4)

    return pl.pallas_call(
        _conv2_kernel,
        out_shape=jax.ShapeDtypeStruct((M, cp), jnp.float32),
        grid=(gm,),
        in_specs=[pl.BlockSpec((tm, K), lambda i: (i, 0)),
                  pl.BlockSpec((K, cp), lambda i: (0, 0)),
                  pl.BlockSpec((1, cp), lambda i: (0, 0)),
                  pl.BlockSpec((tm, cp), lambda i: (i, 0))],
        out_specs=pl.BlockSpec((tm, cp), lambda i: (i, 0)),
        compiler_params=pltpu.CompilerParams(
            dimension_semantics=("parallel",),
            vmem_limit_bytes=_vmem_limit(vmem)),
        cost_estimate=cost,
    )(cols, w2p, shift2, residual)


# ------------------------------- JAX glue ----------------------------------

def im2col(x_nhwc, ksize, stride, pad, dtype=jnp.bfloat16):
    """(M, kh*kw*C) patch matrix (built directly in `dtype`) + output spatial shape."""
    N, H, W, C = x_nhwc.shape
    xp = jnp.pad(x_nhwc.astype(dtype), ((0, 0), (pad, pad), (pad, pad), (0, 0)))
    Ho = (H + 2 * pad - ksize) // stride + 1
    Wo = (W + 2 * pad - ksize) // stride + 1
    patches = [xp[:, kh:kh + stride * Ho:stride, kw:kw + stride * Wo:stride, :]
               for kh in range(ksize) for kw in range(ksize)]
    cols = jnp.concatenate(patches, axis=-1)             # (N, Ho, Wo, k*k*C)
    return cols.reshape(N * Ho * Wo, ksize * ksize * C), (N, Ho, Wo)


def conv_weight_to_mat(w_oihw):
    """(Cout, Cin, kh, kw) -> (kh*kw*Cin, Cout), matching im2col ordering."""
    Cout, Cin, kh, kw = w_oihw.shape
    return jnp.transpose(w_oihw, (2, 3, 1, 0)).reshape(kh * kw * Cin, Cout)


def fold_bn(conv_bias, gamma, beta, mean, var, eps=1e-5):
    """Eval-mode BN -> per-channel (scale, shift); scale is folded into weights."""
    scale = gamma / jnp.sqrt(var + eps)
    shift = (conv_bias - mean) * scale + beta
    return scale, shift


def build_fused_w13(w1, w3, bn1_scale, cp):
    """[W1*bn1_scale | W3] as one (9*Cin, 2*cp) bf16 matrix.

    The 1x1-stride-2 conv reads exactly the centre tap (kh=kw=1) of the
    3x3-stride-2 im2col window, i.e. rows [4*Cin, 5*Cin) of the patch matrix.
    """
    Cout, Cin, _, _ = w1.shape
    w1_mat = conv_weight_to_mat(w1) * bn1_scale.reshape(1, -1)     # (9*Cin, Cout)
    w3_mat = jnp.transpose(w3, (2, 3, 1, 0)).reshape(Cin, Cout)    # (Cin, Cout)
    w13 = jnp.zeros((9 * Cin, 2 * cp), jnp.float32)
    w13 = w13.at[:, :Cout].set(w1_mat)
    w13 = w13.at[4 * Cin:5 * Cin, cp:cp + Cout].set(w3_mat)
    return w13.astype(jnp.bfloat16)


def build_w2p(w2, bn2_scale, cp):
    """W2*bn2_scale scattered to the lane-padded channel layout: (9*cp, cp) bf16."""
    Cout = w2.shape[0]
    w2_mat = (conv_weight_to_mat(w2) * bn2_scale.reshape(1, -1)).reshape(9, Cout, Cout)
    w2p = jnp.zeros((9, cp, cp), jnp.float32).at[:, :Cout, :Cout].set(w2_mat)
    return w2p.reshape(9 * cp, cp).astype(jnp.bfloat16)


def residual_forward(x_nchw, params, eps=1e-5):
    """Forward pass of the Residual block. Input NCHW (PyTorch convention)."""
    x = jnp.transpose(x_nchw, (0, 2, 3, 1))                       # NHWC f32
    Cout = params["w1"].shape[0]
    cp = _round_up(Cout, _LANE)

    s1, b1 = fold_bn(params["b1"], params["bn1_g"], params["bn1_b"],
                     params["bn1_m"], params["bn1_v"], eps)
    s2, b2 = fold_bn(params["b2"], params["bn2_g"], params["bn2_b"],
                     params["bn2_m"], params["bn2_v"], eps)

    # --- call 1: fused conv1 (3x3 s2 p1 + BN + ReLU) and conv3 (1x1 s2 + bias)
    cols1, (N, Ho, Wo) = im2col(x, ksize=3, stride=2, pad=1)      # (M, 9*Cin) bf16
    w13 = build_fused_w13(params["w1"], params["w3"], s1, cp)     # (9*Cin, 2*cp) bf16
    shift13 = jnp.zeros((1, 2 * cp), jnp.float32)
    shift13 = shift13.at[:, :Cout].set(b1.reshape(1, -1))
    shift13 = shift13.at[:, cp:cp + Cout].set(params["b3"].reshape(1, -1))

    y1, y3 = fused_conv13(cols1, w13, shift13, cp)                # (M, cp) bf16 each

    # --- call 2: conv2 (3x3 s1 p1 + BN) + shortcut add + ReLU
    cols2, _ = im2col(y1.reshape(N, Ho, Wo, cp), ksize=3, stride=1, pad=1)
    w2p = build_w2p(params["w2"], s2, cp)                         # (9*cp, cp) bf16
    shift2 = jnp.zeros((1, cp), jnp.float32).at[:, :Cout].set(b2.reshape(1, -1))

    out = fused_conv2(cols2, w2p, shift2, y3)                     # (M, cp) f32
    out = out[:, :Cout].reshape(N, Ho, Wo, Cout)
    return jnp.transpose(out, (0, 3, 1, 2))                       # back to NCHW


# --------------------------- pure-JAX reference -----------------------------

def _conv_ref(x_nhwc, w_oihw, bias, stride, pad):
    w_hwio = jnp.transpose(w_oihw, (2, 3, 1, 0))
    y = lax.conv_general_dilated(
        x_nhwc, w_hwio, window_strides=(stride, stride),
        padding=[(pad, pad), (pad, pad)],
        dimension_numbers=("NHWC", "HWIO", "NHWC"))
    return y + bias.reshape(1, 1, 1, -1)


def residual_reference(x_nchw, params, eps=1e-5):
    x = jnp.transpose(x_nchw, (0, 2, 3, 1)).astype(jnp.float32)

    def bn(y, g, b, m, v):
        return (y - m) / jnp.sqrt(v + eps) * g + b

    y = _conv_ref(x, params["w1"], params["b1"], 2, 1)
    y = bn(y, params["bn1_g"], params["bn1_b"], params["bn1_m"], params["bn1_v"])
    y = jnp.maximum(y, 0.0)
    y = _conv_ref(y, params["w2"], params["b2"], 1, 1)
    y = bn(y, params["bn2_g"], params["bn2_b"], params["bn2_m"], params["bn2_v"])
    sc = _conv_ref(x, params["w3"], params["b3"], 2, 0)
    out = jnp.maximum(y + sc, 0.0)
    return jnp.transpose(out, (0, 3, 1, 2))


# --------------------------------- main -------------------------------------

if __name__ == "__main__":
    key = jax.random.PRNGKey(0)
    ks = jax.random.split(key, 15)

    N, Cin, H, W = 2, 4, 16, 16
    Cout = 8

    params = {
        "w1": 0.1 * jax.random.normal(ks[0], (Cout, Cin, 3, 3), jnp.float32),
        "b1": 0.1 * jax.random.normal(ks[1], (Cout,), jnp.float32),
        "bn1_g": 1.0 + 0.1 * jax.random.normal(ks[2], (Cout,), jnp.float32),
        "bn1_b": 0.1 * jax.random.normal(ks[3], (Cout,), jnp.float32),
        "bn1_m": 0.05 * jax.random.normal(ks[4], (Cout,), jnp.float32),
        "bn1_v": 1.0 + 0.1 * jnp.abs(jax.random.normal(ks[5], (Cout,), jnp.float32)),
        "w2": 0.1 * jax.random.normal(ks[6], (Cout, Cout, 3, 3), jnp.float32),
        "b2": 0.1 * jax.random.normal(ks[7], (Cout,), jnp.float32),
        "bn2_g": 1.0 + 0.1 * jax.random.normal(ks[8], (Cout,), jnp.float32),
        "bn2_b": 0.1 * jax.random.normal(ks[9], (Cout,), jnp.float32),
        "bn2_m": 0.05 * jax.random.normal(ks[10], (Cout,), jnp.float32),
        "bn2_v": 1.0 + 0.1 * jnp.abs(jax.random.normal(ks[11], (Cout,), jnp.float32)),
        "w3": 0.1 * jax.random.normal(ks[12], (Cout, Cin, 1, 1), jnp.float32),
        "b3": 0.1 * jax.random.normal(ks[13], (Cout,), jnp.float32),
    }

    x = jax.random.normal(ks[14], (N, Cin, H, W), jnp.float32)

    forward = jax.jit(residual_forward)
    out = jax.block_until_ready(forward(x, params))
    ref = jax.block_until_ready(residual_reference(x, params))

    assert out.shape == (N, Cout, H // 2, W // 2), out.shape
    # bf16 matmul operands & bf16 intermediates (f32 accumulate) vs f32 reference.
    assert jnp.allclose(out, ref, atol=3e-2, rtol=3e-2), \
        float(jnp.max(jnp.abs(out - ref)))

    print("KERNEL_OK")
</pallas_src>

<mosaic_0001>
module attributes {stable_mosaic.version = 11 : i64} {
  func.func @_conv13_kernel(%arg0: i32, %arg1: memref<64x36xbf16, #tpu.memory_space<vmem>>, %arg2: memref<36x256xbf16, #tpu.memory_space<vmem>>, %arg3: memref<1x256xf32, #tpu.memory_space<vmem>>, %arg4: memref<64x128xbf16, #tpu.memory_space<vmem>>, %arg5: memref<64x128xbf16, #tpu.memory_space<vmem>>) attributes {dimension_semantics = [#tpu.dimension_semantics<parallel>], iteration_bounds = array<i64: 2>, scalar_prefetch = 0 : i64, scratch_operands = 0 : i64, tpu.core_type = #tpu.core_type<tc>, window_params = [{transform_indices = @transform_0, window_bounds = array<i64: 64, 36>}, {pipeline_mode = #tpu.pipeline_mode<synchronous>, transform_indices = @transform_1, window_bounds = array<i64: 36, 256>}, {pipeline_mode = #tpu.pipeline_mode<synchronous>, transform_indices = @transform_2, window_bounds = array<i64: 1, 256>}, {transform_indices = @transform_3, window_bounds = array<i64: 64, 128>}, {transform_indices = @transform_4, window_bounds = array<i64: 64, 128>}]} {
    %c0 = arith.constant 0 : index
    %c0_0 = arith.constant 0 : index
    %0 = vector.load %arg1[%c0, %c0_0] : memref<64x36xbf16, #tpu.memory_space<vmem>>, vector<64x36xbf16>
    %c0_1 = arith.constant 0 : index
    %c0_2 = arith.constant 0 : index
    %1 = vector.load %arg2[%c0_1, %c0_2] : memref<36x256xbf16, #tpu.memory_space<vmem>>, vector<36x256xbf16>
    %cst = arith.constant dense<0.000000e+00> : vector<64x256xf32>
    %2 = tpu.matmul %0, %1, %cst {dimension_numbers = #tpu.dot_dimension_numbers<[1], [0], [0], [1], [0, 0, 1, 1], [], []>} : vector<64x36xbf16>, vector<36x256xbf16>, vector<64x256xf32> -> vector<64x256xf32>
    %c0_3 = arith.constant 0 : index
    %c0_4 = arith.constant 0 : index
    %3 = vector.load %arg3[%c0_3, %c0_4] : memref<1x256xf32, #tpu.memory_space<vmem>>, vector<1x256xf32>
    %4 = vector.broadcast %3 : vector<1x256xf32> to vector<64x256xf32>
    %5 = arith.addf %2, %4 : vector<64x256xf32>
    %6 = vector.extract_strided_slice %5 {offsets = [0, 0], sizes = [64, 128], strides = [1, 1]} : vector<64x256xf32> to vector<64x128xf32>
    %cst_5 = arith.constant 0.000000e+00 : f32
    %7 = vector.broadcast %cst_5 : f32 to vector<64x128xf32>
    %8 = arith.maximumf %6, %7 : vector<64x128xf32>
    %9 = arith.truncf %8 : vector<64x128xf32> to vector<64x128xbf16>
    %c0_6 = arith.constant 0 : index
    %c0_7 = arith.constant 0 : index
    %10 = vector.load %arg4[%c0_6, %c0_7] : memref<64x128xbf16, #tpu.memory_space<vmem>>, vector<64x128xbf16>
    tpu.vector_store %arg4[%c0_6, %c0_7], %9 {strides = array<i32>} : memref<64x128xbf16, #tpu.memory_space<vmem>>, vector<64x128xbf16>,
    %11 = vector.extract_strided_slice %5 {offsets = [0, 128], sizes = [64, 128], strides = [1, 1]} : vector<64x256xf32> to vector<64x128xf32>
    %12 = arith.truncf %11 : vector<64x128xf32> to vector<64x128xbf16>
    %c0_8 = arith.constant 0 : index
    %c0_9 = arith.constant 0 : index
    %13 = vector.load %arg5[%c0_8, %c0_9] : memref<64x128xbf16, #tpu.memory_space<vmem>>, vector<64x128xbf16>
    tpu.vector_store %arg5[%c0_8, %c0_9], %12 {strides = array<i32>} : memref<64x128xbf16, #tpu.memory_space<vmem>>, vector<64x128xbf16>,
    return
  }
  func.func @transform_0(%arg0: i32) -> (i32, i32) {
    %c0_i32 = arith.constant 0 : i32
    %c0_i32_0 = arith.constant 0 : i32
    return %arg0, %c0_i32 : i32, i32
  }
  func.func @transform_1(%arg0: i32) -> (i32, i32) {
    %c0_i32 = arith.constant 0 : i32
    %c0_i32_0 = arith.constant 0 : i32
    %c0_i32_1 = arith.constant 0 : i32
    return %c0_i32, %c0_i32_0 : i32, i32
  }
  func.func @transform_2(%arg0: i32) -> (i32, i32) {
    %c0_i32 = arith.constant 0 : i32
    %c0_i32_0 = arith.constant 0 : i32
    %c0_i32_1 = arith.constant 0 : i32
    return %c0_i32, %c0_i32_0 : i32, i32
  }
  func.func @transform_3(%arg0: i32) -> (i32, i32) {
    %c0_i32 = arith.constant 0 : i32
    %c0_i32_0 = arith.constant 0 : i32
    return %arg0, %c0_i32 : i32, i32
  }
  func.func @transform_4(%arg0: i32) -> (i32, i32) {
    %c0_i32 = arith.constant 0 : i32
    %c0_i32_0 = arith.constant 0 : i32
    return %arg0, %c0_i32 : i32, i32
  }
}

module attributes {stable_mosaic.version = 11 : i64} {
  func.func @_conv2_kernel(%arg0: i32, %arg1: memref<64x1152xbf16, #tpu.memory_space<vmem>>, %arg2: memref<1152x128xbf16, #tpu.memory_space<vmem>>, %arg3: memref<1x128xf32, #tpu.memory_space<vmem>>, %arg4: memref<64x128xbf16, #tpu.memory_space<vmem>>, %arg5: memref<64x128xf32, #tpu.memory_space<vmem>>) attributes {dimension_semantics = [#tpu.dimension_semantics<parallel>], iteration_bounds = array<i64: 2>, scalar_prefetch = 0 : i64, scratch_operands = 0 : i64, tpu.core_type = #tpu.core_type<tc>, window_params = [{transform_indices = @transform_0, window_bounds = array<i64: 64, 1152>}, {pipeline_mode = #tpu.pipeline_mode<synchronous>, transform_indices = @transform_1, window_bounds = array<i64: 1152, 128>}, {pipeline_mode = #tpu.pipeline_mode<synchronous>, transform_indices = @transform_2, window_bounds = array<i64: 1, 128>}, {transform_indices = @transform_3, window_bounds = array<i64: 64, 128>}, {transform_indices = @transform_4, window_bounds = array<i64: 64, 128>}]} {
    %c0 = arith.constant 0 : index
    %c0_0 = arith.constant 0 : index
    %0 = vector.load %arg1[%c0, %c0_0] : memref<64x1152xbf16, #tpu.memory_space<vmem>>, vector<64x1152xbf16>
    %c0_1 = arith.constant 0 : index
    %c0_2 = arith.constant 0 : index
    %1 = vector.load %arg2[%c0_1, %c0_2] : memref<1152x128xbf16, #tpu.memory_space<vmem>>, vector<1152x128xbf16>
    %cst = arith.constant dense<0.000000e+00> : vector<64x128xf32>
    %2 = tpu.matmul %0, %1, %cst {dimension_numbers = #tpu.dot_dimension_numbers<[1], [0], [0], [1], [0, 0, 1, 1], [], []>} : vector<64x1152xbf16>, vector<1152x128xbf16>, vector<64x128xf32> -> vector<64x128xf32>
    %c0_3 = arith.constant 0 : index
    %c0_4 = arith.constant 0 : index
    %3 = vector.load %arg3[%c0_3, %c0_4] : memref<1x128xf32, #tpu.memory_space<vmem>>, vector<1x128xf32>
    %4 = vector.broadcast %3 : vector<1x128xf32> to vector<64x128xf32>
    %5 = arith.addf %2, %4 : vector<64x128xf32>
    %c0_5 = arith.constant 0 : index
    %c0_6 = arith.constant 0 : index
    %6 = vector.load %arg4[%c0_5, %c0_6] : memref<64x128xbf16, #tpu.memory_space<vmem>>, vector<64x128xbf16>
    %7 = arith.extf %6 : vector<64x128xbf16> to vector<64x128xf32>
    %8 = arith.addf %5, %7 : vector<64x128xf32>
    %cst_7 = arith.constant 0.000000e+00 : f32
    %9 = vector.broadcast %cst_7 : f32 to vector<64x128xf32>
    %10 = arith.maximumf %8, %9 : vector<64x128xf32>
    %c0_8 = arith.constant 0 : index
    %c0_9 = arith.constant 0 : index
    %11 = vector.load %arg5[%c0_8, %c0_9] : memref<64x128xf32, #tpu.memory_space<vmem>>, vector<64x128xf32>
    tpu.vector_store %arg5[%c0_8, %c0_9], %10 {strides = array<i32>} : memref<64x128xf32, #tpu.memory_space<vmem>>, vector<64x128xf32>,
    return
  }
  func.func @transform_0(%arg0: i32) -> (i32, i32) {
    %c0_i32 = arith.constant 0 : i32
    %c0_i32_0 = arith.constant 0 : i32
    return %arg0, %c0_i32 : i32, i32
  }
  func.func @transform_1(%arg0: i32) -> (i32, i32) {
    %c0_i32 = arith.constant 0 : i32
    %c0_i32_0 = arith.constant 0 : i32
    %c0_i32_1 = arith.constant 0 : i32
    return %c0_i32, %c0_i32_0 : i32, i32
  }
  func.func @transform_2(%arg0: i32) -> (i32, i32) {
    %c0_i32 = arith.constant 0 : i32
    %c0_i32_0 = arith.constant 0 : i32
    %c0_i32_1 = arith.constant 0 : i32
    return %c0_i32, %c0_i32_0 : i32, i32
  }
  func.func @transform_3(%arg0: i32) -> (i32, i32) {
    %c0_i32 = arith.constant 0 : i32
    %c0_i32_0 = arith.constant 0 : i32
    return %arg0, %c0_i32 : i32, i32
  }
  func.func @transform_4(%arg0: i32) -> (i32, i32) {
    %c0_i32 = arith.constant 0 : i32
    %c0_i32_0 = arith.constant 0 : i32
    return %arg0, %c0_i32 : i32, i32
  }
}

</mosaic_0001>

<llo_original>
// kernel: residual_forward.2
$region0: #{residual_forward.2}
  #allocation0 [shape = 'u32[]', space=smem, size = 0x4, offset = 0x4, fixed_abs, tag = 'smem constant byte address 0x4 - core index']
  #allocation1 [shape = 'u32[144,128]{1,0:T(1,128)}', space=vmem, size = 0x12000, scoped, tag = 'internal scratch']
  %s0 = inlined_call_operand.vmem [shape: bf16[128,36], index: 0, kind: input, shape index: {}]
  %s1 = inlined_call_operand.vmem [shape: bf16[36,256], index: 1, kind: input, shape index: {}]
  %s2 = inlined_call_operand.vmem [shape: f32[1,256], index: 2, kind: input, shape index: {}]
  %s3 = inlined_call_operand.vmem [shape: bf16[128,128], index: 3, kind: output, shape index: {0}]
  %s4 = inlined_call_operand.vmem [shape: bf16[128,128], index: 4, kind: output, shape index: {1}]
  %5 = xla_tuple %s3, %s4
  %s6 = sld [smem:[#allocation0]]
  $region53: #{residual_forward.2} parent=0
    _
  %s8 = ssub.s32 1, %s6
  %s9 = scalar_select 0, %s8, %s6
  loop: start=0, step=1, limit=4
  $region2: #{residual_forward.2} parent=0 // loop_pre_header
    _
  $region3: #{residual_forward.2} parent=0 // loop_header
    %s11 = sphi 0, %s15
    %p12 = scmp.ge.s32.totalorder %s11, 4
    %s21 = sphi 0, %s23
    %s24 = sphi 0, %s21
    %s25 = sphi 0, %s24
    %s41 = sphi 0, %s25
    %s45 = sphi 0, %s45
    %s47 = sphi 0, %s45
    %s48 = sphi 0, %s47
    %s62 = sphi 0, %s48
    %s66 = sphi 0, %s66
    %s68 = sphi 0, %s66
    %s69 = sphi 0, %s68
    %s83 = sphi 0, %s69
    %s89 = sphi 0, %s91
    %s92 = sphi 0, %s89
    %s93 = sphi 0, %s92
    %s109 = sphi 0, %s93
    %s115 = sphi 0, %s117
    %s118 = sphi 0, %s115
    %s119 = sphi 0, %s118
    %s135 = sphi 0, %s119
  $region4: #{residual_forward.2} parent=0 // loop_header_branch
    %14 = sbr.rel (%p12) target = $region8
  $region5: #{residual_forward.2} parent=0 // loop_body
    %s16 = ssub.s32 %s11, 1
    %s17 = ssub.s32 %s11, 2
    %s18 = sadd.s32 %s11, 1
    %s19 = ssub.s32 %s11, %s18
    %p20 = scmp.eq.s32.totalorder %s19, 0
    %s22 = sadd.s32 %s21, 1
    %s23 = scalar_select %p20, %s21, %s22
    %p26 = pneg %p20
    %p27 = scmp.eq.s32.totalorder %s11, 1
    %p28 = por %p26, %p27
    %p29 = scmp.ne.s32.totalorder %s21, %s24
    %p30 = scmp.eq.s32.totalorder %s11, 0
    %p31 = por %p29, %p30
    %p32 = scmp.ne.s32.totalorder %s21, %s24
    %p33 = scmp.eq.s32.totalorder %s16, 1
    %p34 = por %p32, %p33
    %p35 = scmp.ne.s32.totalorder %s24, %s25
    %p36 = scmp.eq.s32.totalorder %s16, 0
    %p37 = por %p35, %p36
    %p38 = scmp.ne.s32.totalorder %s24, %s25
    %p39 = scmp.eq.s32.totalorder %s17, 1
    %p40 = por %p38, %p39
    %p42 = scmp.ne.s32.totalorder %s25, %s41
    %p43 = scmp.eq.s32.totalorder %s17, 0
    %p44 = por %p42, %p43
    %s46 = sadd.s32 %s45, 1
    %p49 = scmp.eq.s32.totalorder %s11, 1
    %p50 = scmp.ne.s32.totalorder %s45, %s47
    %p51 = scmp.eq.s32.totalorder %s11, 0
    %p52 = por %p50, %p51
    %p53 = scmp.ne.s32.totalorder %s45, %s47
    %p54 = scmp.eq.s32.totalorder %s16, 1
    %p55 = por %p53, %p54
    %p56 = scmp.ne.s32.totalorder %s47, %s48
    %p57 = scmp.eq.s32.totalorder %s16, 0
    %p58 = por %p56, %p57
    %p59 = scmp.ne.s32.totalorder %s47, %s48
    %p60 = scmp.eq.s32.totalorder %s17, 1
    %p61 = por %p59, %p60
    %p63 = scmp.ne.s32.totalorder %s48, %s62
    %p64 = scmp.eq.s32.totalorder %s17, 0
    %p65 = por %p63, %p64
    %s67 = sadd.s32 %s66, 1
    %p70 = scmp.eq.s32.totalorder %s11, 1
    %p71 = scmp.ne.s32.totalorder %s66, %s68
    %p72 = scmp.eq.s32.totalorder %s11, 0
    %p73 = por %p71, %p72
    %p74 = scmp.ne.s32.totalorder %s66, %s68
    %p75 = scmp.eq.s32.totalorder %s16, 1
    %p76 = por %p74, %p75
    %p77 = scmp.ne.s32.totalorder %s68, %s69
    %p78 = scmp.eq.s32.totalorder %s16, 0
    %p79 = por %p77, %p78
    %p80 = scmp.ne.s32.totalorder %s68, %s69
    %p81 = scmp.eq.s32.totalorder %s17, 1
    %p82 = por %p80, %p81
    %p84 = scmp.ne.s32.totalorder %s69, %s83
    %p85 = scmp.eq.s32.totalorder %s17, 0
    %p86 = por %p84, %p85
    %s87 = ssub.s32 %s11, %s18
    %p88 = scmp.eq.s32.totalorder %s87, 0
    %s90 = sadd.s32 %s89, 1
    %s91 = scalar_select %p88, %s89, %s90
    %p94 = pneg %p88
    %p95 = scmp.eq.s32.totalorder %s11, 1
    %p96 = por %p94, %p95
    %p97 = scmp.ne.s32.totalorder %s89, %s92
    %p98 = scmp.eq.s32.totalorder %s11, 0
    %p99 = por %p97, %p98
    %p100 = scmp.ne.s32.totalorder %s89, %s92
    %p101 = scmp.eq.s32.totalorder %s16, 1
    %p102 = por %p100, %p101
    %p103 = scmp.ne.s32.totalorder %s92, %s93
    %p104 = scmp.eq.s32.totalorder %s16, 0
    %p105 = por %p103, %p104
    %p106 = scmp.ne.s32.totalorder %s92, %s93
    %p107 = scmp.eq.s32.totalorder %s17, 1
    %p108 = por %p106, %p107
    %p110 = scmp.ne.s32.totalorder %s93, %s109
    %p111 = scmp.eq.s32.totalorder %s17, 0
    %p112 = por %p110, %p111
    %s113 = ssub.s32 %s11, %s18
    %p114 = scmp.eq.s32.totalorder %s113, 0
    %s116 = sadd.s32 %s115, 1
    %s117 = scalar_select %p114, %s115, %s116
    %p120 = pneg %p114
    %p121 = scmp.eq.s32.totalorder %s11, 1
    %p122 = por %p120, %p121
    %p123 = scmp.ne.s32.totalorder %s115, %s118
    %p124 = scmp.eq.s32.totalorder %s11, 0
    %p125 = por %p123, %p124
    %p126 = scmp.ne.s32.totalorder %s115, %s118
    %p127 = scmp.eq.s32.totalorder %s16, 1
    %p128 = por %p126, %p127
    %p129 = scmp.ne.s32.totalorder %s118, %s119
    %p130 = scmp.eq.s32.totalorder %s16, 0
    %p131 = por %p129, %p130
    %p132 = scmp.ne.s32.totalorder %s118, %s119
    %p133 = scmp.eq.s32.totalorder %s17, 1
    %p134 = por %p132, %p133
    %p136 = scmp.ne.s32.totalorder %s119, %s135
    %p137 = scmp.eq.s32.totalorder %s17, 0
    %p138 = por %p136, %p137
    %p139 = scmp.le.s32.totalorder 1, %s11
    %p140 = scmp.lt.s32.totalorder %s11, 3
    %p141 = pnand %p139, %p140
    %p142 = pneg %p141
    // Predicated region
    $region9: #{residual_forward.2} parent=5 // pred_check
      _
    $region10: #{residual_forward.2} parent=5 // pred_check_branch
      %144 = sbr.rel (%p141) target = $region12
    $region11: #{residual_forward.2} parent=5 // pred_region
      %s145 = ssub.s32 %s11, 1
      // Predicated region
      $region13: #{residual_forward.2} parent=11 // pred_check
        %p146 = pneg %p58
      $region14: #{residual_forward.2} parent=11 // pred_check_branch
        %148 = sbr.rel (%p146) target = $region16
      $region15: #{residual_forward.2} parent=11 // pred_region
        _
      $region16: #{residual_forward.2} parent=11 // pred_fallthru
        _
      // Predicated region
      $region17: #{residual_forward.2} parent=11 // pred_check
        %p149 = pneg %p79
      $region18: #{residual_forward.2} parent=11 // pred_check_branch
        %151 = sbr.rel (%p149) target = $region20
      $region19: #{residual_forward.2} parent=11 // pred_region
        _
      $region20: #{residual_forward.2} parent=11 // pred_fallthru
        _
    $region12: #{residual_forward.2} parent=5 // pred_fallthru
      _
    %p152 = scmp.lt.s32.totalorder %s11, 2
    // Predicated region
    $region21: #{residual_forward.2} parent=5 // pred_check
      %p153 = pneg %p152
    $region22: #{residual_forward.2} parent=5 // pred_check_branch
      %155 = sbr.rel (%p153) target = $region24
    $region23: #{residual_forward.2} parent=5 // pred_region
      // Predicated region
      $region25: #{residual_forward.2} parent=23 // pred_check
        %p156 = pneg %p31
      $region26: #{residual_forward.2} parent=23 // pred_check_branch
        %158 = sbr.rel (%p156) target = $region28
      $region27: #{residual_forward.2} parent=23 // pred_region
        %s159 = smul.u32 8, %s11
        %p160 = scmp.lt.s32.totalorder %s159, 15
        %s161 = scalar_select %p160, %s159, 15
        %s162 = smul.addr %s161, 4
        %s163 = scalar_lea.vmem %s0, %s162
        %s164 = smul.u32 8, %s11
      $region28: #{residual_forward.2} parent=23 // pred_fallthru
        _
    $region24: #{residual_forward.2} parent=5 // pred_fallthru
      _
    %p165 = scmp.le.s32.totalorder 1, %s11
    %p166 = scmp.lt.s32.totalorder %s11, 3
    %p167 = pnand %p165, %p166
    %p168 = pneg %p167
    // Predicated region
    $region29: #{residual_forward.2} parent=5 // pred_check
      _
    $region30: #{residual_forward.2} parent=5 // pred_check_branch
      %170 = sbr.rel (%p167) target = $region32
    $region31: #{residual_forward.2} parent=5 // pred_region
      %s171 = ssub.s32 %s11, 1
      %s172 = smul.u32 8, %s16
      %p173 = scmp.lt.s32.totalorder %s172, 15
      %s174 = scalar_select %p173, %s172, 15
      %s175 = smul.addr %s174, 4
      %s176 = scalar_lea.vmem %s0, %s175
      %p177 = pneg %p37
      %p178 = pneg %p34
      %p179 = pneg %p58
      %p180 = pneg %p55
      %p181 = pneg %p79
      %p182 = pneg %p76
      %p183 = pneg %p105
      %p184 = pneg %p102
      %s185 = smul.u32 8, %s16
      %p186 = scmp.lt.s32.totalorder %s185, 15
      %s187 = scalar_select %p186, %s185, 15
      %s188 = smul.addr %s187, 4
      %s189 = scalar_lea.vmem %s3, %s188
      %p190 = pneg %p131
      %p191 = pneg %p128
      %s192 = smul.u32 8, %s16
      %p193 = scmp.lt.s32.totalorder %s192, 15
      %s194 = scalar_select %p193, %s192, 15
      %s195 = smul.addr %s194, 4
      %s196 = scalar_lea.vmem %s4, %s195
      %s197 = smul.u32 8, %s16
      %p198 = scmp.lt.s32.totalorder %s197, 15
      %s199 = scalar_select %p198, %s197, 15
      %s200 = smul.addr %s199, 4
      %s201 = scalar_lea.vmem %s0, %s200
      %s202 = smul.u32 8, %s16
      %s203 = smul.u32 8, %s16
      %p204 = scmp.lt.s32.totalorder %s203, 15
      %s205 = scalar_select %p204, %s203, 15
      %s206 = smul.addr %s205, 4
      %s207 = scalar_lea.vmem %s3, %s206
      %s208 = smul.u32 8, %s16
      %s209 = smul.u32 8, %s16
      %p210 = scmp.lt.s32.totalorder %s209, 15
      %s211 = scalar_select %p210, %s209, 15
      %s212 = smul.addr %s211, 4
      %s213 = scalar_lea.vmem %s4, %s212
      %s214 = smul.u32 8, %s16
      %v216 = vld [vmem:[%s201] sm:$0xf]
      %v217 = vld [vmem:[%s201 + $0x4] sm:$0xf]
      %v218 = vld [vmem:[%s201 + $0x8] sm:$0xf]
      %v219 = vld [vmem:[%s201 + $0xc] sm:$0xf]
      %v220 = vld [vmem:[%s201 + $0x10] sm:$0xf]
      %v221 = vld [vmem:[%s201 + $0x14] sm:$0xf]
      %v222 = vld [vmem:[%s201 + $0x18] sm:$0xf]
      %v223 = vld [vmem:[%s201 + $0x1c] sm:$0xf]
      %v224 = vld [vmem:[%s1] sm:$0xff]
      %v225 = vld [vmem:[%s1 + $0x8] sm:$0xff]
      %v226 = vld [vmem:[%s1 + $0x10] sm:$0xff]
      %v227 = vld [vmem:[%s1 + $0x18] sm:$0xff]
      %v228 = vld [vmem:[%s1 + $0x20] sm:$0x33]
      %v229 = vld [vmem:[%s2] sm:$0x3]
      %v231 = vlaneseq
      %v232 = vshrl.u32 %v231, 7
      %v233 = vsub.s32 0, %v232
      %v234 = vrot.slane %v229, %v233
      %v235 = vlaneseq
      %v236 = vshrl.u32 %v235, 7
      %v237 = vsub.s32 1, %v236
      %v238 = vrot.slane %v229, %v237
      %v249 = vunpack.c.l.b16 %v216
      %v250 = vunpack.c.l.b16 %v217
      %v251 = vunpack.c.l.b16 %v218
      %v252 = vunpack.c.l.b16 %v219
      %v253 = vunpack.c.l.b16 %v220
      %v254 = vunpack.c.l.b16 %v221
      %v255 = vunpack.c.l.b16 %v222
      %v256 = vunpack.c.l.b16 %v223
      %v257 = vpack.c.b16 %v250, %v249
      %v258 = vpack.c.b16 %v252, %v251
      %v259 = vpack.c.b16 %v254, %v253
      %v260 = vpack.c.b16 %v256, %v255
      %v266 = vunpack.c.l.b16 %v224
      %v267 = vunpack.c.h.b16 %v224
      %v268 = vunpack.c.l.b16 %v225
      %v269 = vunpack.c.h.b16 %v225
      %v270 = vunpack.c.l.b16 %v226
      %v271 = vunpack.c.h.b16 %v226
      %v272 = vunpack.c.l.b16 %v227
      %v273 = vunpack.c.h.b16 %v227
      %v274 = vunpack.c.l.b16 %v228
      %v275 = vunpack.c.h.b16 %v228
      %v276 = vpack.c.b16 %v268, %v266
      %v277 = vpack.c.b16 %v269, %v267
      %v278 = vpack.c.b16 %v272, %v270
      %v279 = vpack.c.b16 %v273, %v271
      %v280 = vpack.c.b16 %v274, %v274
      %v281 = vpack.c.b16 %v275, %v275
      %vm286 = vcmask 293888
      %v288 = vsel %vm286, %v257, 0
      %v291 = vsel %vm286, %v258, 0
      %v294 = vsel %vm286, %v259, 0
      %v297 = vsel %vm286, %v260, 0
      %vm299 = vcmask 1041408
      %v301 = vsel %vm299, %v280, 0
      %v304 = vsel %vm299, %v281, 0
      %306 = vmatprep.subr.bf16.mxu0 %v277
      %307 = vmatpush1.bf16.msra.mxu0 %v276
      %308 = vmatprep.subr.bf16.mxu0 %v279
      %309 = vmatpush1.bf16.msra.mxu0 %v278
      %310 = vmatprep.subr.bf16.mxu0 %v304
      %311 = vmatpush1.bf16.msra.mxu0 %v301
      %312 = vmatprep.subr.bf16.mxu0 0
      %313 = vmatpush1.bf16.msra.mxu0 0
      %314 = vmatprep.subr.bf16.mxu0 0
      %315 = vmatpush1.bf16.msra.mxu0 0
      %316 = vmatprep.subr.bf16.mxu0 0
      %317 = vmatpush1.bf16.msra.mxu0 0
      %318 = vmatprep.subr.bf16.mxu0 0
      %319 = vmatpush1.bf16.msra.mxu0 0
      %320 = vmatprep.subr.bf16.mxu0 0
      %321 = vmatpush1.bf16.msra.mxu0 0
      %322 = vmatprep.subr.bf16.mxu0 0
      %323 = vmatpush1.bf16.msra.mxu0 0
      %324 = vmatprep.subr.bf16.mxu0 0
      %325 = vmatpush1.bf16.msra.mxu0 0
      %326 = vmatprep.subr.bf16.mxu0 0
      %327 = vmatpush1.bf16.msra.mxu0 0
      %328 = vmatprep.subr.bf16.mxu0 0
      %329 = vmatpush1.bf16.msra.mxu0 0
      %330 = vmatprep.subr.bf16.mxu0 0
      %331 = vmatpush1.bf16.msra.mxu0 0
      %332 = vmatprep.subr.bf16.mxu0 0
      %333 = vmatpush1.bf16.msra.mxu0 0
      %334 = vmatprep.subr.bf16.mxu0 0
      %335 = vmatpush1.bf16.msra.mxu0 0
      %336 = vmatprep.subr.bf16.mxu0 0
      %337 = vmatpush1.bf16.msra.mxu0 0
      %338 = vmatprep.mubr.bf16.mxu0 0
      %339 = vmatmul.mubr.bf16.gmra.mrb[0].mxu0 %v288
      %v340 = vpop.f32.mrb[0].mxu0
      %v341 = vadd.f32 %v234, %v340
      %v342 = vpop.f32.mrb[0].mxu0
      %v343 = vadd.f32 %v238, %v342
      %v344 = vpop.f32.mrb[0].mxu0
      %v345 = vadd.f32 %v234, %v344
      %v346 = vpop.f32.mrb[0].mxu0
      %v347 = vadd.f32 %v238, %v346
      %348 = vmatprep.mubr.bf16.mxu0 0
      %349 = vmatmul.mubr.bf16.gmra.mrb[0].mxu0 %v291
      %v350 = vpop.f32.mrb[0].mxu0
      %v351 = vadd.f32 %v234, %v350
      %v352 = vpop.f32.mrb[0].mxu0
      %v353 = vadd.f32 %v238, %v352
      %v354 = vpop.f32.mrb[0].mxu0
      %v355 = vadd.f32 %v234, %v354
      %v356 = vpop.f32.mrb[0].mxu0
      %v357 = vadd.f32 %v238, %v356
      %358 = vmatprep.mubr.bf16.mxu0 0
      %359 = vmatmul.mubr.bf16.gmra.mrb[0].mxu0 %v294
      %v360 = vpop.f32.mrb[0].mxu0
      %v361 = vadd.f32 %v234, %v360
      %v362 = vpop.f32.mrb[0].mxu0
      %v363 = vadd.f32 %v238, %v362
      %v364 = vpop.f32.mrb[0].mxu0
      %v365 = vadd.f32 %v234, %v364
      %v366 = vpop.f32.mrb[0].mxu0
      %v367 = vadd.f32 %v238, %v366
      %368 = vmatprep.mubr.bf16.mxu0 0
      %369 = vmatmul.mubr.bf16.gmra.mrb[0].mxu0 %v297
      %v370 = vpop.f32.mrb[0].mxu0
      %v371 = vadd.f32 %v234, %v370
      %v372 = vpop.f32.mrb[0].mxu0
      %v373 = vadd.f32 %v238, %v372
      %v374 = vpop.f32.mrb[0].mxu0
      %v375 = vadd.f32 %v234, %v374
      %v376 = vpop.f32.mrb[0].mxu0
      %v377 = vadd.f32 %v238, %v376
      %378 = vdwg.mxu0
      %v379 = vmax.f32 %v341, 0.0
      %v380 = vmax.f32 %v345, 0.0
      %v381 = vmax.f32 %v351, 0.0
      %v382 = vmax.f32 %v355, 0.0
      %v383 = vmax.f32 %v361, 0.0
      %v384 = vmax.f32 %v365, 0.0
      %v385 = vmax.f32 %v371, 0.0
      %v386 = vmax.f32 %v375, 0.0
      %v387 = vpack.c.bf16 %v380, %v379
      %v388 = vpack.c.bf16 %v382, %v381
      %v389 = vpack.c.bf16 %v384, %v383
      %v390 = vpack.c.bf16 %v386, %v385
      %v395 = vunpack.c.l.b16 %v387
      %v396 = vunpack.c.h.b16 %v387
      %v397 = vunpack.c.l.b16 %v388
      %v398 = vunpack.c.h.b16 %v388
      %v399 = vunpack.c.l.b16 %v389
      %v400 = vunpack.c.h.b16 %v389
      %v401 = vunpack.c.l.b16 %v390
      %v402 = vunpack.c.h.b16 %v390
      %v403 = vpack.c.b16 %v395, %v395
      %v404 = vpack.c.b16 %v396, %v396
      %v405 = vpack.c.b16 %v397, %v397
      %v406 = vpack.c.b16 %v398, %v398
      %v407 = vpack.c.b16 %v399, %v399
      %v408 = vpack.c.b16 %v400, %v400
      %v409 = vpack.c.b16 %v401, %v401
      %v410 = vpack.c.b16 %v402, %v402
      %419 = vst [vmem:[%s207] sm:$0xf] %v403
      %420 = vst [vmem:[%s207 + $0x4] sm:$0xf] %v404
      %421 = vst [vmem:[%s207 + $0x8] sm:$0xf] %v405
      %422 = vst [vmem:[%s207 + $0xc] sm:$0xf] %v406
      %423 = vst [vmem:[%s207 + $0x10] sm:$0xf] %v407
      %424 = vst [vmem:[%s207 + $0x14] sm:$0xf] %v408
      %425 = vst [vmem:[%s207 + $0x18] sm:$0xf] %v409
      %426 = vst [vmem:[%s207 + $0x1c] sm:$0xf] %v410
      %v427 = vpack.c.bf16 %v347, %v343
      %v428 = vpack.c.bf16 %v357, %v353
      %v429 = vpack.c.bf16 %v367, %v363
      %v430 = vpack.c.bf16 %v377, %v373
      %v435 = vunpack.c.l.b16 %v427
      %v436 = vunpack.c.h.b16 %v427
      %v437 = vunpack.c.l.b16 %v428
      %v438 = vunpack.c.h.b16 %v428
      %v439 = vunpack.c.l.b16 %v429
      %v440 = vunpack.c.h.b16 %v429
      %v441 = vunpack.c.l.b16 %v430
      %v442 = vunpack.c.h.b16 %v430
      %v443 = vpack.c.b16 %v435, %v435
      %v444 = vpack.c.b16 %v436, %v436
      %v445 = vpack.c.b16 %v437, %v437
      %v446 = vpack.c.b16 %v438, %v438
      %v447 = vpack.c.b16 %v439, %v439
      %v448 = vpack.c.b16 %v440, %v440
      %v449 = vpack.c.b16 %v441, %v441
      %v450 = vpack.c.b16 %v442, %v442
      %459 = vst [vmem:[%s213] sm:$0xf] %v443
      %460 = vst [vmem:[%s213 + $0x4] sm:$0xf] %v444
      %461 = vst [vmem:[%s213 + $0x8] sm:$0xf] %v445
      %462 = vst [vmem:[%s213 + $0xc] sm:$0xf] %v446
      %463 = vst [vmem:[%s213 + $0x10] sm:$0xf] %v447
      %464 = vst [vmem:[%s213 + $0x14] sm:$0xf] %v448
      %465 = vst [vmem:[%s213 + $0x18] sm:$0xf] %v449
      %466 = vst [vmem:[%s213 + $0x1c] sm:$0xf] %v450
      %s467 = smul.u32 8, %s16
      %p468 = scmp.lt.s32.totalorder %s467, 15
      %s469 = scalar_select %p468, %s467, 15
      %s470 = smul.addr %s469, 4
      %s471 = scalar_lea.vmem %s3, %s470
      %s472 = smul.u32 8, %s16
      %p473 = scmp.lt.s32.totalorder %s472, 15
      %s474 = scalar_select %p473, %s472, 15
      %s475 = smul.addr %s474, 4
      %s476 = scalar_lea.vmem %s4, %s475
      // Predicated region
      $region33: #{residual_forward.2} parent=31 // pred_check
        %p477 = pneg %p102
      $region34: #{residual_forward.2} parent=31 // pred_check_branch
        %479 = sbr.rel (%p477) target = $region36
      $region35: #{residual_forward.2} parent=31 // pred_region
        %s480 = smul.u32 8, %s16
      $region36: #{residual_forward.2} parent=31 // pred_fallthru
        _
      // Predicated region
      $region37: #{residual_forward.2} parent=31 // pred_check
        %p481 = pneg %p128
      $region38: #{residual_forward.2} parent=31 // pred_check_branch
        %483 = sbr.rel (%p481) target = $region40
      $region39: #{residual_forward.2} parent=31 // pred_region
        %s484 = smul.u32 8, %s16
      $region40: #{residual_forward.2} parent=31 // pred_fallthru
        _
    $region32: #{residual_forward.2} parent=5 // pred_fallthru
      _
    %p485 = scmp.le.s32.totalorder 2, %s11
    // Predicated region
    $region41: #{residual_forward.2} parent=5 // pred_check
      %p486 = pneg %p485
    $region42: #{residual_forward.2} parent=5 // pred_check_branch
      %488 = sbr.rel (%p486) target = $region44
    $region43: #{residual_forward.2} parent=5 // pred_region
      %s489 = ssub.s32 %s11, 2
      // Predicated region
      $region45: #{residual_forward.2} parent=43 // pred_check
        %p490 = pneg %p108
      $region46: #{residual_forward.2} parent=43 // pred_check_branch
        %492 = sbr.rel (%p490) target = $region48
      $region47: #{residual_forward.2} parent=43 // pred_region
        %s493 = smul.u32 8, %s17
        %p494 = scmp.lt.s32.totalorder %s493, 15
        %s495 = scalar_select %p494, %s493, 15
        %s496 = smul.addr %s495, 4
        %s497 = scalar_lea.vmem %s3, %s496
      $region48: #{residual_forward.2} parent=43 // pred_fallthru
        _
      // Predicated region
      $region49: #{residual_forward.2} parent=43 // pred_check
        %p498 = pneg %p134
      $region50: #{residual_forward.2} parent=43 // pred_check_branch
        %500 = sbr.rel (%p498) target = $region52
      $region51: #{residual_forward.2} parent=43 // pred_region
        %s501 = smul.u32 8, %s17
        %p502 = scmp.lt.s32.totalorder %s501, 15
        %s503 = scalar_select %p502, %s501, 15
        %s504 = smul.addr %s503, 4
        %s505 = scalar_lea.vmem %s4, %s504
      $region52: #{residual_forward.2} parent=43 // pred_fallthru
        _
    $region44: #{residual_forward.2} parent=5 // pred_fallthru
      _
  $region6: #{residual_forward.2} parent=0 // loop_footer
    %s15 = sadd.s32 1, %s11
  $region7: #{residual_forward.2} parent=0 // loop_footer_branch
    %10 = sbr.rel target = $region3
  $region8: #{residual_forward.2} parent=0 // loop_exit
    _

// kernel: residual_forward.3
$region0: #{residual_forward.3}
  #allocation0 [shape = 'u32[]', space=smem, size = 0x4, offset = 0x4, fixed_abs, tag = 'smem constant byte address 0x4 - core index']
  #allocation1 [shape = 'u32[144,128]{1,0:T(1,128)}', space=vmem, size = 0x12000, scoped, tag = 'internal scratch']
  %s0 = inlined_call_operand.vmem [shape: bf16[128,1152], index: 0, kind: input, shape index: {}]
  %s1 = inlined_call_operand.vmem [shape: bf16[1152,128], index: 1, kind: input, shape index: {}]
  %s2 = inlined_call_operand.vmem [shape: f32[1,128], index: 2, kind: input, shape index: {}]
  %s3 = inlined_call_operand.vmem [shape: bf16[128,128], index: 3, kind: input, shape index: {}]
  %s4 = inlined_call_operand.vmem [shape: f32[128,128], index: 4, kind: output, shape index: {}]
  %s5 = sld [smem:[#allocation0]]
  $region49: #{residual_forward.3} parent=0
    _
  %s7 = ssub.s32 1, %s5
  %s8 = scalar_select 0, %s7, %s5
  loop: start=0, step=1, limit=4
  $region2: #{residual_forward.3} parent=0 // loop_pre_header
    _
  $region3: #{residual_forward.3} parent=0 // loop_header
    %s10 = sphi 0, %s14
    %p11 = scmp.ge.s32.totalorder %s10, 4
    %s20 = sphi 0, %s22
    %s23 = sphi 0, %s20
    %s24 = sphi 0, %s23
    %s40 = sphi 0, %s24
    %s44 = sphi 0, %s44
    %s46 = sphi 0, %s44
    %s47 = sphi 0, %s46
    %s61 = sphi 0, %s47
    %s65 = sphi 0, %s65
    %s67 = sphi 0, %s65
    %s68 = sphi 0, %s67
    %s82 = sphi 0, %s68
    %s88 = sphi 0, %s90
    %s91 = sphi 0, %s88
    %s92 = sphi 0, %s91
    %s108 = sphi 0, %s92
    %s114 = sphi 0, %s116
    %s117 = sphi 0, %s114
    %s118 = sphi 0, %s117
    %s134 = sphi 0, %s118
  $region4: #{residual_forward.3} parent=0 // loop_header_branch
    %13 = sbr.rel (%p11) target = $region8
  $region5: #{residual_forward.3} parent=0 // loop_body
    %s15 = ssub.s32 %s10, 1
    %s16 = ssub.s32 %s10, 2
    %s17 = sadd.s32 %s10, 1
    %s18 = ssub.s32 %s10, %s17
    %p19 = scmp.eq.s32.totalorder %s18, 0
    %s21 = sadd.s32 %s20, 1
    %s22 = scalar_select %p19, %s20, %s21
    %p25 = pneg %p19
    %p26 = scmp.eq.s32.totalorder %s10, 1
    %p27 = por %p25, %p26
    %p28 = scmp.ne.s32.totalorder %s20, %s23
    %p29 = scmp.eq.s32.totalorder %s10, 0
    %p30 = por %p28, %p29
    %p31 = scmp.ne.s32.totalorder %s20, %s23
    %p32 = scmp.eq.s32.totalorder %s15, 1
    %p33 = por %p31, %p32
    %p34 = scmp.ne.s32.totalorder %s23, %s24
    %p35 = scmp.eq.s32.totalorder %s15, 0
    %p36 = por %p34, %p35
    %p37 = scmp.ne.s32.totalorder %s23, %s24
    %p38 = scmp.eq.s32.totalorder %s16, 1
    %p39 = por %p37, %p38
    %p41 = scmp.ne.s32.totalorder %s24, %s40
    %p42 = scmp.eq.s32.totalorder %s16, 0
    %p43 = por %p41, %p42
    %s45 = sadd.s32 %s44, 1
    %p48 = scmp.eq.s32.totalorder %s10, 1
    %p49 = scmp.ne.s32.totalorder %s44, %s46
    %p50 = scmp.eq.s32.totalorder %s10, 0
    %p51 = por %p49, %p50
    %p52 = scmp.ne.s32.totalorder %s44, %s46
    %p53 = scmp.eq.s32.totalorder %s15, 1
    %p54 = por %p52, %p53
    %p55 = scmp.ne.s32.totalorder %s46, %s47
    %p56 = scmp.eq.s32.totalorder %s15, 0
    %p57 = por %p55, %p56
    %p58 = scmp.ne.s32.totalorder %s46, %s47
    %p59 = scmp.eq.s32.totalorder %s16, 1
    %p60 = por %p58, %p59
    %p62 = scmp.ne.s32.totalorder %s47, %s61
    %p63 = scmp.eq.s32.totalorder %s16, 0
    %p64 = por %p62, %p63
    %s66 = sadd.s32 %s65, 1
    %p69 = scmp.eq.s32.totalorder %s10, 1
    %p70 = scmp.ne.s32.totalorder %s65, %s67
    %p71 = scmp.eq.s32.totalorder %s10, 0
    %p72 = por %p70, %p71
    %p73 = scmp.ne.s32.totalorder %s65, %s67
    %p74 = scmp.eq.s32.totalorder %s15, 1
    %p75 = por %p73, %p74
    %p76 = scmp.ne.s32.totalorder %s67, %s68
    %p77 = scmp.eq.s32.totalorder %s15, 0
    %p78 = por %p76, %p77
    %p79 = scmp.ne.s32.totalorder %s67, %s68
    %p80 = scmp.eq.s32.totalorder %s16, 1
    %p81 = por %p79, %p80
    %p83 = scmp.ne.s32.totalorder %s68, %s82
    %p84 = scmp.eq.s32.totalorder %s16, 0
    %p85 = por %p83, %p84
    %s86 = ssub.s32 %s10, %s17
    %p87 = scmp.eq.s32.totalorder %s86, 0
    %s89 = sadd.s32 %s88, 1
    %s90 = scalar_select %p87, %s88, %s89
    %p93 = pneg %p87
    %p94 = scmp.eq.s32.totalorder %s10, 1
    %p95 = por %p93, %p94
    %p96 = scmp.ne.s32.totalorder %s88, %s91
    %p97 = scmp.eq.s32.totalorder %s10, 0
    %p98 = por %p96, %p97
    %p99 = scmp.ne.s32.totalorder %s88, %s91
    %p100 = scmp.eq.s32.totalorder %s15, 1
    %p101 = por %p99, %p100
    %p102 = scmp.ne.s32.totalorder %s91, %s92
    %p103 = scmp.eq.s32.totalorder %s15, 0
    %p104 = por %p102, %p103
    %p105 = scmp.ne.s32.totalorder %s91, %s92
    %p106 = scmp.eq.s32.totalorder %s16, 1
    %p107 = por %p105, %p106
    %p109 = scmp.ne.s32.totalorder %s92, %s108
    %p110 = scmp.eq.s32.totalorder %s16, 0
    %p111 = por %p109, %p110
    %s112 = ssub.s32 %s10, %s17
    %p113 = scmp.eq.s32.totalorder %s112, 0
    %s115 = sadd.s32 %s114, 1
    %s116 = scalar_select %p113, %s114, %s115
    %p119 = pneg %p113
    %p120 = scmp.eq.s32.totalorder %s10, 1
    %p121 = por %p119, %p120
    %p122 = scmp.ne.s32.totalorder %s114, %s117
    %p123 = scmp.eq.s32.totalorder %s10, 0
    %p124 = por %p122, %p123
    %p125 = scmp.ne.s32.totalorder %s114, %s117
    %p126 = scmp.eq.s32.totalorder %s15, 1
    %p127 = por %p125, %p126
    %p128 = scmp.ne.s32.totalorder %s117, %s118
    %p129 = scmp.eq.s32.totalorder %s15, 0
    %p130 = por %p128, %p129
    %p131 = scmp.ne.s32.totalorder %s117, %s118
    %p132 = scmp.eq.s32.totalorder %s16, 1
    %p133 = por %p131, %p132
    %p135 = scmp.ne.s32.totalorder %s118, %s134
    %p136 = scmp.eq.s32.totalorder %s16, 0
    %p137 = por %p135, %p136
    %p138 = scmp.le.s32.totalorder 1, %s10
    %p139 = scmp.lt.s32.totalorder %s10, 3
    %p140 = pnand %p138, %p139
    %p141 = pneg %p140
    // Predicated region
    $region9: #{residual_forward.3} parent=5 // pred_check
      _
    $region10: #{residual_forward.3} parent=5 // pred_check_branch
      %143 = sbr.rel (%p140) target = $region12
    $region11: #{residual_forward.3} parent=5 // pred_region
      %s144 = ssub.s32 %s10, 1
      // Predicated region
      $region13: #{residual_forward.3} parent=11 // pred_check
        %p145 = pneg %p57
      $region14: #{residual_forward.3} parent=11 // pred_check_branch
        %147 = sbr.rel (%p145) target = $region16
      $region15: #{residual_forward.3} parent=11 // pred_region
        _
      $region16: #{residual_forward.3} parent=11 // pred_fallthru
        _
      // Predicated region
      $region17: #{residual_forward.3} parent=11 // pred_check
        %p148 = pneg %p78
      $region18: #{residual_forward.3} parent=11 // pred_check_branch
        %150 = sbr.rel (%p148) target = $region20
      $region19: #{residual_forward.3} parent=11 // pred_region
        _
      $region20: #{residual_forward.3} parent=11 // pred_fallthru
        _
    $region12: #{residual_forward.3} parent=5 // pred_fallthru
      _
    %p151 = scmp.lt.s32.totalorder %s10, 2
    // Predicated region
    $region21: #{residual_forward.3} parent=5 // pred_check
      %p152 = pneg %p151
    $region22: #{residual_forward.3} parent=5 // pred_check_branch
      %154 = sbr.rel (%p152) target = $region24
    $region23: #{residual_forward.3} parent=5 // pred_region
      // Predicated region
      $region25: #{residual_forward.3} parent=23 // pred_check
        %p155 = pneg %p30
      $region26: #{residual_forward.3} parent=23 // pred_check_branch
        %157 = sbr.rel (%p155) target = $region28
      $region27: #{residual_forward.3} parent=23 // pred_region
        %s158 = smul.u32 8, %s10
        %p159 = scmp.lt.s32.totalorder %s158, 15
        %s160 = scalar_select %p159, %s158, 15
        %s161 = smul.addr %s160, 9
        %s162 = smul.addr %s161, 4
        %s163 = scalar_lea.vmem %s0, %s162
        %s164 = smul.u32 8, %s10
      $region28: #{residual_forward.3} parent=23 // pred_fallthru
        _
      // Predicated region
      $region29: #{residual_forward.3} parent=23 // pred_check
        %p165 = pneg %p98
      $region30: #{residual_forward.3} parent=23 // pred_check_branch
        %167 = sbr.rel (%p165) target = $region32
      $region31: #{residual_forward.3} parent=23 // pred_region
        %s168 = smul.u32 8, %s10
        %p169 = scmp.lt.s32.totalorder %s168, 15
        %s170 = scalar_select %p169, %s168, 15
        %s171 = smul.addr %s170, 4
        %s172 = scalar_lea.vmem %s3, %s171
        %s173 = smul.u32 8, %s10
      $region32: #{residual_forward.3} parent=23 // pred_fallthru
        _
    $region24: #{residual_forward.3} parent=5 // pred_fallthru
      _
    %p174 = scmp.le.s32.totalorder 1, %s10
    %p175 = scmp.lt.s32.totalorder %s10, 3
    %p176 = pnand %p174, %p175
    %p177 = pneg %p176
    // Predicated region
    $region33: #{residual_forward.3} parent=5 // pred_check
      _
    $region34: #{residual_forward.3} parent=5 // pred_check_branch
      %179 = sbr.rel (%p176) target = $region36
    $region35: #{residual_forward.3} parent=5 // pred_region
      %s180 = ssub.s32 %s10, 1
      %s181 = smul.u32 8, %s15
      %p182 = scmp.lt.s32.totalorder %s181, 15
      %s183 = scalar_select %p182, %s181, 15
      %s184 = smul.addr %s183, 9
      %s185 = smul.addr %s184, 4
      %s186 = scalar_lea.vmem %s0, %s185
      %p187 = pneg %p36
      %p188 = pneg %p33
      %p189 = pneg %p57
      %p190 = pneg %p54
      %p191 = pneg %p78
      %p192 = pneg %p75
      %s193 = smul.u32 8, %s15
      %p194 = scmp.lt.s32.totalorder %s193, 15
      %s195 = scalar_select %p194, %s193, 15
      %s196 = smul.addr %s195, 4
      %s197 = scalar_lea.vmem %s3, %s196
      %p198 = pneg %p104
      %p199 = pneg %p101
      %p200 = pneg %p130
      %p201 = pneg %p127
      %s202 = smul.u32 8, %s15
      %p203 = scmp.lt.s32.totalorder %s202, 15
      %s204 = scalar_select %p203, %s202, 15
      %s205 = smul.addr %s204, 8
      %s206 = scalar_lea.vmem %s4, %s205
      %s207 = smul.u32 8, %s15
      %p208 = scmp.lt.s32.totalorder %s207, 15
      %s209 = scalar_select %p208, %s207, 15
      %s210 = smul.addr %s209, 9
      %s211 = smul.addr %s210, 4
      %s212 = scalar_lea.vmem %s0, %s211
      %s213 = smul.u32 8, %s15
      %s214 = smul.u32 8, %s15
      %p215 = scmp.lt.s32.totalorder %s214, 15
      %s216 = scalar_select %p215, %s214, 15
      %s217 = smul.addr %s216, 4
      %s218 = scalar_lea.vmem %s3, %s217
      %s219 = smul.u32 8, %s15
      %s220 = smul.u32 8, %s15
      %p221 = scmp.lt.s32.totalorder %s220, 15
      %s222 = scalar_select %p221, %s220, 15
      %s223 = smul.addr %s222, 8
      %s224 = scalar_lea.vmem %s4, %s223
      %s225 = smul.u32 8, %s15
      %v227 = vld [vmem:[%s212] sm:$0xff]
      %v228 = vld [vmem:[%s212 + $0x8] sm:$0xff]
      %v229 = vld [vmem:[%s212 + $0x10] sm:$0xff]
      %v230 = vld [vmem:[%s212 + $0x18] sm:$0xff]
      %v231 = vld [vmem:[%s212 + $0x20] sm:$0xf]
      %v232 = vld [vmem:[%s212 + $0x24] sm:$0xff]
      %v233 = vld [vmem:[%s212 + $0x2c] sm:$0xff]
      %v234 = vld [vmem:[%s212 + $0x34] sm:$0xff]
      %v235 = vld [vmem:[%s212 + $0x3c] sm:$0xff]
      %v236 = vld [vmem:[%s212 + $0x44] sm:$0xf]
      %v237 = vld [vmem:[%s212 + $0x48] sm:$0xff]
      %v238 = vld [vmem:[%s212 + $0x50] sm:$0xff]
      %v239 = vld [vmem:[%s212 + $0x58] sm:$0xff]
      %v240 = vld [vmem:[%s212 + $0x60] sm:$0xff]
      %v241 = vld [vmem:[%s212 + $0x68] sm:$0xf]
      %v242 = vld [vmem:[%s212 + $0x6c] sm:$0xff]
      %v243 = vld [vmem:[%s212 + $0x74] sm:$0xff]
      %v244 = vld [vmem:[%s212 + $0x7c] sm:$0xff]
      %v245 = vld [vmem:[%s212 + $0x84] sm:$0xff]
      %v246 = vld [vmem:[%s212 + $0x8c] sm:$0xf]
      %v247 = vld [vmem:[%s212 + $0x90] sm:$0xff]
      %v248 = vld [vmem:[%s212 + $0x98] sm:$0xff]
      %v249 = vld [vmem:[%s212 + $0xa0] sm:$0xff]
      %v250 = vld [vmem:[%s212 + $0xa8] sm:$0xff]
      %v251 = vld [vmem:[%s212 + $0xb0] sm:$0xf]
      %v252 = vld [vmem:[%s212 + $0xb4] sm:$0xff]
      %v253 = vld [vmem:[%s212 + $0xbc] sm:$0xff]
      %v254 = vld [vmem:[%s212 + $0xc4] sm:$0xff]
      %v255 = vld [vmem:[%s212 + $0xcc] sm:$0xff]
      %v256 = vld [vmem:[%s212 + $0xd4] sm:$0xf]
      %v257 = vld [vmem:[%s212 + $0xd8] sm:$0xff]
      %v258 = vld [vmem:[%s212 + $0xe0] sm:$0xff]
      %v259 = vld [vmem:[%s212 + $0xe8] sm:$0xff]
      %v260 = vld [vmem:[%s212 + $0xf0] sm:$0xff]
      %v261 = vld [vmem:[%s212 + $0xf8] sm:$0xf]
      %v262 = vld [vmem:[%s212 + $0xfc] sm:$0xff]
      %v263 = vld [vmem:[%s212 + $0x104] sm:$0xff]
      %v264 = vld [vmem:[%s212 + $0x10c] sm:$0xff]
      %v265 = vld [vmem:[%s212 + $0x114] sm:$0xff]
      %v266 = vld [vmem:[%s212 + $0x11c] sm:$0xf]
      %v267 = vld [vmem:[%s1] sm:$0xf]
      %v268 = vld [vmem:[%s1 + $0x4] sm:$0xf]
      %v269 = vld [vmem:[%s1 + $0x8] sm:$0xf]
      %v270 = vld [vmem:[%s1 + $0xc] sm:$0xf]
      %v271 = vld [vmem:[%s1 + $0x10] sm:$0xf]
      %v272 = vld [vmem:[%s1 + $0x14] sm:$0xf]
      %v273 = vld [vmem:[%s1 + $0x18] sm:$0xf]
      %v274 = vld [vmem:[%s1 + $0x1c] sm:$0xf]
      %v275 = vld [vmem:[%s1 + $0x20] sm:$0xf]
      %v276 = vld [vmem:[%s1 + $0x24] sm:$0xf]
      %v277 = vld [vmem:[%s1 + $0x28] sm:$0xf]
      %v278 = vld [vmem:[%s1 + $0x2c] sm:$0xf]
      %v279 = vld [vmem:[%s1 + $0x30] sm:$0xf]
      %v280 = vld [vmem:[%s1 + $0x34] sm:$0xf]
      %v281 = vld [vmem:[%s1 + $0x38] sm:$0xf]
      %v282 = vld [vmem:[%s1 + $0x3c] sm:$0xf]
      %v283 = vld [vmem:[%s1 + $0x40] sm:$0xf]
      %v284 = vld [vmem:[%s1 + $0x44] sm:$0xf]
      %v285 = vld [vmem:[%s1 + $0x48] sm:$0xf]
      %v286 = vld [vmem:[%s1 + $0x4c] sm:$0xf]
      %v287 = vld [vmem:[%s1 + $0x50] sm:$0xf]
      %v288 = vld [vmem:[%s1 + $0x54] sm:$0xf]
      %v289 = vld [vmem:[%s1 + $0x58] sm:$0xf]
      %v290 = vld [vmem:[%s1 + $0x5c] sm:$0xf]
      %v291 = vld [vmem:[%s1 + $0x60] sm:$0xf]
      %v292 = vld [vmem:[%s1 + $0x64] sm:$0xf]
      %v293 = vld [vmem:[%s1 + $0x68] sm:$0xf]
      %v294 = vld [vmem:[%s1 + $0x6c] sm:$0xf]
      %v295 = vld [vmem:[%s1 + $0x70] sm:$0xf]
      %v296 = vld [vmem:[%s1 + $0x74] sm:$0xf]
      %v297 = vld [vmem:[%s1 + $0x78] sm:$0xf]
      %v298 = vld [vmem:[%s1 + $0x7c] sm:$0xf]
      %v299 = vld [vmem:[%s1 + $0x80] sm:$0xf]
      %v300 = vld [vmem:[%s1 + $0x84] sm:$0xf]
      %v301 = vld [vmem:[%s1 + $0x88] sm:$0xf]
      %v302 = vld [vmem:[%s1 + $0x8c] sm:$0xf]
      %v303 = vld [vmem:[%s1 + $0x90] sm:$0xf]
      %v304 = vld [vmem:[%s1 + $0x94] sm:$0xf]
      %v305 = vld [vmem:[%s1 + $0x98] sm:$0xf]
      %v306 = vld [vmem:[%s1 + $0x9c] sm:$0xf]
      %v307 = vld [vmem:[%s1 + $0xa0] sm:$0xf]
      %v308 = vld [vmem:[%s1 + $0xa4] sm:$0xf]
      %v309 = vld [vmem:[%s1 + $0xa8] sm:$0xf]
      %v310 = vld [vmem:[%s1 + $0xac] sm:$0xf]
      %v311 = vld [vmem:[%s1 + $0xb0] sm:$0xf]
      %v312 = vld [vmem:[%s1 + $0xb4] sm:$0xf]
      %v313 = vld [vmem:[%s1 + $0xb8] sm:$0xf]
      %v314 = vld [vmem:[%s1 + $0xbc] sm:$0xf]
      %v315 = vld [vmem:[%s1 + $0xc0] sm:$0xf]
      %v316 = vld [vmem:[%s1 + $0xc4] sm:$0xf]
      %v317 = vld [vmem:[%s1 + $0xc8] sm:$0xf]
      %v318 = vld [vmem:[%s1 + $0xcc] sm:$0xf]
      %v319 = vld [vmem:[%s1 + $0xd0] sm:$0xf]
      %v320 = vld [vmem:[%s1 + $0xd4] sm:$0xf]
      %v321 = vld [vmem:[%s1 + $0xd8] sm:$0xf]
      %v322 = vld [vmem:[%s1 + $0xdc] sm:$0xf]
      %v323 = vld [vmem:[%s1 + $0xe0] sm:$0xf]
      %v324 = vld [vmem:[%s1 + $0xe4] sm:$0xf]
      %v325 = vld [vmem:[%s1 + $0xe8] sm:$0xf]
      %v326 = vld [vmem:[%s1 + $0xec] sm:$0xf]
      %v327 = vld [vmem:[%s1 + $0xf0] sm:$0xf]
      %v328 = vld [vmem:[%s1 + $0xf4] sm:$0xf]
      %v329 = vld [vmem:[%s1 + $0xf8] sm:$0xf]
      %v330 = vld [vmem:[%s1 + $0xfc] sm:$0xf]
      %v331 = vld [vmem:[%s1 + $0x100] sm:$0xf]
      %v332 = vld [vmem:[%s1 + $0x104] sm:$0xf]
      %v333 = vld [vmem:[%s1 + $0x108] sm:$0xf]
      %v334 = vld [vmem:[%s1 + $0x10c] sm:$0xf]
      %v335 = vld [vmem:[%s1 + $0x110] sm:$0xf]
      %v336 = vld [vmem:[%s1 + $0x114] sm:$0xf]
      %v337 = vld [vmem:[%s1 + $0x118] sm:$0xf]
      %v338 = vld [vmem:[%s1 + $0x11c] sm:$0xf]
      %v339 = vld [vmem:[%s1 + $0x120] sm:$0xf]
      %v340 = vld [vmem:[%s1 + $0x124] sm:$0xf]
      %v341 = vld [vmem:[%s1 + $0x128] sm:$0xf]
      %v342 = vld [vmem:[%s1 + $0x12c] sm:$0xf]
      %v343 = vld [vmem:[%s1 + $0x130] sm:$0xf]
      %v344 = vld [vmem:[%s1 + $0x134] sm:$0xf]
      %v345 = vld [vmem:[%s1 + $0x138] sm:$0xf]
      %v346 = vld [vmem:[%s1 + $0x13c] sm:$0xf]
      %v347 = vld [vmem:[%s1 + $0x140] sm:$0xf]
      %v348 = vld [vmem:[%s1 + $0x144] sm:$0xf]
      %v349 = vld [vmem:[%s1 + $0x148] sm:$0xf]
      %v350 = vld [vmem:[%s1 + $0x14c] sm:$0xf]
      %v351 = vld [vmem:[%s1 + $0x150] sm:$0xf]
      %v352 = vld [vmem:[%s1 + $0x154] sm:$0xf]
      %v353 = vld [vmem:[%s1 + $0x158] sm:$0xf]
      %v354 = vld [vmem:[%s1 + $0x15c] sm:$0xf]
      %v355 = vld [vmem:[%s1 + $0x160] sm:$0xf]
      %v356 = vld [vmem:[%s1 + $0x164] sm:$0xf]
      %v357 = vld [vmem:[%s1 + $0x168] sm:$0xf]
      %v358 = vld [vmem:[%s1 + $0x16c] sm:$0xf]
      %v359 = vld [vmem:[%s1 + $0x170] sm:$0xf]
      %v360 = vld [vmem:[%s1 + $0x174] sm:$0xf]
      %v361 = vld [vmem:[%s1 + $0x178] sm:$0xf]
      %v362 = vld [vmem:[%s1 + $0x17c] sm:$0xf]
      %v363 = vld [vmem:[%s1 + $0x180] sm:$0xf]
      %v364 = vld [vmem:[%s1 + $0x184] sm:$0xf]
      %v365 = vld [vmem:[%s1 + $0x188] sm:$0xf]
      %v366 = vld [vmem:[%s1 + $0x18c] sm:$0xf]
      %v367 = vld [vmem:[%s1 + $0x190] sm:$0xf]
      %v368 = vld [vmem:[%s1 + $0x194] sm:$0xf]
      %v369 = vld [vmem:[%s1 + $0x198] sm:$0xf]
      %v370 = vld [vmem:[%s1 + $0x19c] sm:$0xf]
      %v371 = vld [vmem:[%s1 + $0x1a0] sm:$0xf]
      %v372 = vld [vmem:[%s1 + $0x1a4] sm:$0xf]
      %v373 = vld [vmem:[%s1 + $0x1a8] sm:$0xf]
      %v374 = vld [vmem:[%s1 + $0x1ac] sm:$0xf]
      %v375 = vld [vmem:[%s1 + $0x1b0] sm:$0xf]
      %v376 = vld [vmem:[%s1 + $0x1b4] sm:$0xf]
      %v377 = vld [vmem:[%s1 + $0x1b8] sm:$0xf]
      %v378 = vld [vmem:[%s1 + $0x1bc] sm:$0xf]
      %v379 = vld [vmem:[%s1 + $0x1c0] sm:$0xf]
      %v380 = vld [vmem:[%s1 + $0x1c4] sm:$0xf]
      %v381 = vld [vmem:[%s1 + $0x1c8] sm:$0xf]
      %v382 = vld [vmem:[%s1 + $0x1cc] sm:$0xf]
      %v383 = vld [vmem:[%s1 + $0x1d0] sm:$0xf]
      %v384 = vld [vmem:[%s1 + $0x1d4] sm:$0xf]
      %v385 = vld [vmem:[%s1 + $0x1d8] sm:$0xf]
      %v386 = vld [vmem:[%s1 + $0x1dc] sm:$0xf]
      %v387 = vld [vmem:[%s1 + $0x1e0] sm:$0xf]
      %v388 = vld [vmem:[%s1 + $0x1e4] sm:$0xf]
      %v389 = vld [vmem:[%s1 + $0x1e8] sm:$0xf]
      %v390 = vld [vmem:[%s1 + $0x1ec] sm:$0xf]
      %v391 = vld [vmem:[%s1 + $0x1f0] sm:$0xf]
      %v392 = vld [vmem:[%s1 + $0x1f4] sm:$0xf]
      %v393 = vld [vmem:[%s1 + $0x1f8] sm:$0xf]
      %v394 = vld [vmem:[%s1 + $0x1fc] sm:$0xf]
      %v395 = vld [vmem:[%s1 + $0x200] sm:$0xf]
      %v396 = vld [vmem:[%s1 + $0x204] sm:$0xf]
      %v397 = vld [vmem:[%s1 + $0x208] sm:$0xf]
      %v398 = vld [vmem:[%s1 + $0x20c] sm:$0xf]
      %v399 = vld [vmem:[%s1 + $0x210] sm:$0xf]
      %v400 = vld [vmem:[%s1 + $0x214] sm:$0xf]
      %v401 = vld [vmem:[%s1 + $0x218] sm:$0xf]
      %v402 = vld [vmem:[%s1 + $0x21c] sm:$0xf]
      %v403 = vld [vmem:[%s1 + $0x220] sm:$0xf]
      %v404 = vld [vmem:[%s1 + $0x224] sm:$0xf]
      %v405 = vld [vmem:[%s1 + $0x228] sm:$0xf]
      %v406 = vld [vmem:[%s1 + $0x22c] sm:$0xf]
      %v407 = vld [vmem:[%s1 + $0x230] sm:$0xf]
      %v408 = vld [vmem:[%s1 + $0x234] sm:$0xf]
      %v409 = vld [vmem:[%s1 + $0x238] sm:$0xf]
      %v410 = vld [vmem:[%s1 + $0x23c] sm:$0xf]
      %v411 = vld [vmem:[%s2] sm:$0x1]
      %v413 = vlaneseq
      %v414 = vshrl.u32 %v413, 7
      %v415 = vsub.s32 0, %v414
      %v416 = vrot.slane %v411, %v415
      %v458 = vunpack.c.l.b16 %v227
      %v459 = vunpack.c.h.b16 %v227
      %v460 = vunpack.c.l.b16 %v228
      %v461 = vunpack.c.h.b16 %v228
      %v462 = vunpack.c.l.b16 %v229
      %v463 = vunpack.c.h.b16 %v229
      %v464 = vunpack.c.l.b16 %v230
      %v465 = vunpack.c.h.b16 %v230
      %v466 = vunpack.c.l.b16 %v231
      %v467 = vunpack.c.l.b16 %v232
      %v468 = vunpack.c.h.b16 %v232
      %v469 = vunpack.c.l.b16 %v233
      %v470 = vunpack.c.h.b16 %v233
      %v471 = vunpack.c.l.b16 %v234
      %v472 = vunpack.c.h.b16 %v234
      %v473 = vunpack.c.l.b16 %v235
      %v474 = vunpack.c.h.b16 %v235
      %v475 = vunpack.c.l.b16 %v236
      %v476 = vunpack.c.l.b16 %v237
      %v477 = vunpack.c.h.b16 %v237
      %v478 = vunpack.c.l.b16 %v238
      %v479 = vunpack.c.h.b16 %v238
      %v480 = vunpack.c.l.b16 %v239
      %v481 = vunpack.c.h.b16 %v239
      %v482 = vunpack.c.l.b16 %v240
      %v483 = vunpack.c.h.b16 %v240
      %v484 = vunpack.c.l.b16 %v241
      %v485 = vunpack.c.l.b16 %v242
      %v486 = vunpack.c.h.b16 %v242
      %v487 = vunpack.c.l.b16 %v243
      %v488 = vunpack.c.h.b16 %v243
      %v489 = vunpack.c.l.b16 %v244
      %v490 = vunpack.c.h.b16 %v244
      %v491 = vunpack.c.l.b16 %v245
      %v492 = vunpack.c.h.b16 %v245
      %v493 = vunpack.c.l.b16 %v246
      %v494 = vunpack.c.l.b16 %v247
      %v495 = vunpack.c.h.b16 %v247
      %v496 = vunpack.c.l.b16 %v248
      %v497 = vunpack.c.h.b16 %v248
      %v498 = vunpack.c.l.b16 %v249
      %v499 = vunpack.c.h.b16 %v249
      %v500 = vunpack.c.l.b16 %v250
      %v501 = vunpack.c.h.b16 %v250
      %v502 = vunpack.c.l.b16 %v251
      %v503 = vunpack.c.l.b16 %v252
      %v504 = vunpack.c.h.b16 %v252
      %v505 = vunpack.c.l.b16 %v253
      %v506 = vunpack.c.h.b16 %v253
      %v507 = vunpack.c.l.b16 %v254
      %v508 = vunpack.c.h.b16 %v254
      %v509 = vunpack.c.l.b16 %v255
      %v510 = vunpack.c.h.b16 %v255
      %v511 = vunpack.c.l.b16 %v256
      %v512 = vunpack.c.l.b16 %v257
      %v513 = vunpack.c.h.b16 %v257
      %v514 = vunpack.c.l.b16 %v258
      %v515 = vunpack.c.h.b16 %v258
      %v516 = vunpack.c.l.b16 %v259
      %v517 = vunpack.c.h.b16 %v259
      %v518 = vunpack.c.l.b16 %v260
      %v519 = vunpack.c.h.b16 %v260
      %v520 = vunpack.c.l.b16 %v261
      %v521 = vunpack.c.l.b16 %v262
      %v522 = vunpack.c.h.b16 %v262
      %v523 = vunpack.c.l.b16 %v263
      %v524 = vunpack.c.h.b16 %v263
      %v525 = vunpack.c.l.b16 %v264
      %v526 = vunpack.c.h.b16 %v264
      %v527 = vunpack.c.l.b16 %v265
      %v528 = vunpack.c.h.b16 %v265
      %v529 = vunpack.c.l.b16 %v266
      %v530 = vpack.c.b16 %v467, %v458
      %v531 = vpack.c.b16 %v468, %v459
      %v532 = vpack.c.b16 %v469, %v460
      %v533 = vpack.c.b16 %v470, %v461
      %v534 = vpack.c.b16 %v471, %v462
      %v535 = vpack.c.b16 %v472, %v463
      %v536 = vpack.c.b16 %v473, %v464
      %v537 = vpack.c.b16 %v474, %v465
      %v538 = vpack.c.b16 %v475, %v466
      %v539 = vpack.c.b16 %v485, %v476
      %v540 = vpack.c.b16 %v486, %v477
      %v541 = vpack.c.b16 %v487, %v478
      %v542 = vpack.c.b16 %v488, %v479
      %v543 = vpack.c.b16 %v489, %v480
      %v544 = vpack.c.b16 %v490, %v481
      %v545 = vpack.c.b16 %v491, %v482
      %v546 = vpack.c.b16 %v492, %v483
      %v547 = vpack.c.b16 %v493, %v484
      %v548 = vpack.c.b16 %v503, %v494
      %v549 = vpack.c.b16 %v504, %v495
      %v550 = vpack.c.b16 %v505, %v496
      %v551 = vpack.c.b16 %v506, %v497
      %v552 = vpack.c.b16 %v507, %v498
      %v553 = vpack.c.b16 %v508, %v499
      %v554 = vpack.c.b16 %v509, %v500
      %v555 = vpack.c.b16 %v510, %v501
      %v556 = vpack.c.b16 %v511, %v502
      %v557 = vpack.c.b16 %v521, %v512
      %v558 = vpack.c.b16 %v522, %v513
      %v559 = vpack.c.b16 %v523, %v514
      %v560 = vpack.c.b16 %v524, %v515
      %v561 = vpack.c.b16 %v525, %v516
      %v562 = vpack.c.b16 %v526, %v517
      %v563 = vpack.c.b16 %v527, %v518
      %v564 = vpack.c.b16 %v528, %v519
      %v565 = vpack.c.b16 %v529, %v520
      %v746 = vunpack.c.l.b16 %v267
      %v747 = vunpack.c.l.b16 %v268
      %v748 = vunpack.c.l.b16 %v269
      %v749 = vunpack.c.l.b16 %v270
      %v750 = vunpack.c.l.b16 %v271
      %v751 = vunpack.c.l.b16 %v272
      %v752 = vunpack.c.l.b16 %v273
      %v753 = vunpack.c.l.b16 %v274
      %v754 = vunpack.c.l.b16 %v275
      %v755 = vunpack.c.l.b16 %v276
      %v756 = vunpack.c.l.b16 %v277
      %v757 = vunpack.c.l.b16 %v278
      %v758 = vunpack.c.l.b16 %v279
      %v759 = vunpack.c.l.b16 %v280
      %v760 = vunpack.c.l.b16 %v281
      %v761 = vunpack.c.l.b16 %v282
      %v762 = vunpack.c.l.b16 %v283
      %v763 = vunpack.c.l.b16 %v284
      %v764 = vunpack.c.l.b16 %v285
      %v765 = vunpack.c.l.b16 %v286
      %v766 = vunpack.c.l.b16 %v287
      %v767 = vunpack.c.l.b16 %v288
      %v768 = vunpack.c.l.b16 %v289
      %v769 = vunpack.c.l.b16 %v290
      %v770 = vunpack.c.l.b16 %v291
      %v771 = vunpack.c.l.b16 %v292
      %v772 = vunpack.c.l.b16 %v293
      %v773 = vunpack.c.l.b16 %v294
      %v774 = vunpack.c.l.b16 %v295
      %v775 = vunpack.c.l.b16 %v296
      %v776 = vunpack.c.l.b16 %v297
      %v777 = vunpack.c.l.b16 %v298
      %v778 = vunpack.c.l.b16 %v299
      %v779 = vunpack.c.l.b16 %v300
      %v780 = vunpack.c.l.b16 %v301
      %v781 = vunpack.c.l.b16 %v302
      %v782 = vunpack.c.l.b16 %v303
      %v783 = vunpack.c.l.b16 %v304
      %v784 = vunpack.c.l.b16 %v305
      %v785 = vunpack.c.l.b16 %v306
      %v786 = vunpack.c.l.b16 %v307
      %v787 = vunpack.c.l.b16 %v308
      %v788 = vunpack.c.l.b16 %v309
      %v789 = vunpack.c.l.b16 %v310
      %v790 = vunpack.c.l.b16 %v311
      %v791 = vunpack.c.l.b16 %v312
      %v792 = vunpack.c.l.b16 %v313
      %v793 = vunpack.c.l.b16 %v314
      %v794 = vunpack.c.l.b16 %v315
      %v795 = vunpack.c.l.b16 %v316
      %v796 = vunpack.c.l.b16 %v317
      %v797 = vunpack.c.l.b16 %v318
      %v798 = vunpack.c.l.b16 %v319
      %v799 = vunpack.c.l.b16 %v320
      %v800 = vunpack.c.l.b16 %v321
      %v801 = vunpack.c.l.b16 %v322
      %v802 = vunpack.c.l.b16 %v323
      %v803 = vunpack.c.l.b16 %v324
      %v804 = vunpack.c.l.b16 %v325
      %v805 = vunpack.c.l.b16 %v326
      %v806 = vunpack.c.l.b16 %v327
      %v807 = vunpack.c.l.b16 %v328
      %v808 = vunpack.c.l.b16 %v329
      %v809 = vunpack.c.l.b16 %v330
      %v810 = vunpack.c.l.b16 %v331
      %v811 = vunpack.c.l.b16 %v332
      %v812 = vunpack.c.l.b16 %v333
      %v813 = vunpack.c.l.b16 %v334
      %v814 = vunpack.c.l.b16 %v335
      %v815 = vunpack.c.l.b16 %v336
      %v816 = vunpack.c.l.b16 %v337
      %v817 = vunpack.c.l.b16 %v338
      %v818 = vunpack.c.l.b16 %v339
      %v819 = vunpack.c.l.b16 %v340
      %v820 = vunpack.c.l.b16 %v341
      %v821 = vunpack.c.l.b16 %v342
      %v822 = vunpack.c.l.b16 %v343
      %v823 = vunpack.c.l.b16 %v344
      %v824 = vunpack.c.l.b16 %v345
      %v825 = vunpack.c.l.b16 %v346
      %v826 = vunpack.c.l.b16 %v347
      %v827 = vunpack.c.l.b16 %v348
      %v828 = vunpack.c.l.b16 %v349
      %v829 = vunpack.c.l.b16 %v350
      %v830 = vunpack.c.l.b16 %v351
      %v831 = vunpack.c.l.b16 %v352
      %v832 = vunpack.c.l.b16 %v353
      %v833 = vunpack.c.l.b16 %v354
      %v834 = vunpack.c.l.b16 %v355
      %v835 = vunpack.c.l.b16 %v356
      %v836 = vunpack.c.l.b16 %v357
      %v837 = vunpack.c.l.b16 %v358
      %v838 = vunpack.c.l.b16 %v359
      %v839 = vunpack.c.l.b16 %v360
      %v840 = vunpack.c.l.b16 %v361
      %v841 = vunpack.c.l.b16 %v362
      %v842 = vunpack.c.l.b16 %v363
      %v843 = vunpack.c.l.b16 %v364
      %v844 = vunpack.c.l.b16 %v365
      %v845 = vunpack.c.l.b16 %v366
      %v846 = vunpack.c.l.b16 %v367
      %v847 = vunpack.c.l.b16 %v368
      %v848 = vunpack.c.l.b16 %v369
      %v849 = vunpack.c.l.b16 %v370
      %v850 = vunpack.c.l.b16 %v371
      %v851 = vunpack.c.l.b16 %v372
      %v852 = vunpack.c.l.b16 %v373
      %v853 = vunpack.c.l.b16 %v374
      %v854 = vunpack.c.l.b16 %v375
      %v855 = vunpack.c.l.b16 %v376
      %v856 = vunpack.c.l.b16 %v377
      %v857 = vunpack.c.l.b16 %v378
      %v858 = vunpack.c.l.b16 %v379
      %v859 = vunpack.c.l.b16 %v380
      %v860 = vunpack.c.l.b16 %v381
      %v861 = vunpack.c.l.b16 %v382
      %v862 = vunpack.c.l.b16 %v383
      %v863 = vunpack.c.l.b16 %v384
      %v864 = vunpack.c.l.b16 %v385
      %v865 = vunpack.c.l.b16 %v386
      %v866 = vunpack.c.l.b16 %v387
      %v867 = vunpack.c.l.b16 %v388
      %v868 = vunpack.c.l.b16 %v389
      %v869 = vunpack.c.l.b16 %v390
      %v870 = vunpack.c.l.b16 %v391
      %v871 = vunpack.c.l.b16 %v392
      %v872 = vunpack.c.l.b16 %v393
      %v873 = vunpack.c.l.b16 %v394
      %v874 = vunpack.c.l.b16 %v395
      %v875 = vunpack.c.l.b16 %v396
      %v876 = vunpack.c.l.b16 %v397
      %v877 = vunpack.c.l.b16 %v398
      %v878 = vunpack.c.l.b16 %v399
      %v879 = vunpack.c.l.b16 %v400
      %v880 = vunpack.c.l.b16 %v401
      %v881 = vunpack.c.l.b16 %v402
      %v882 = vunpack.c.l.b16 %v403
      %v883 = vunpack.c.l.b16 %v404
      %v884 = vunpack.c.l.b16 %v405
      %v885 = vunpack.c.l.b16 %v406
      %v886 = vunpack.c.l.b16 %v407
      %v887 = vunpack.c.l.b16 %v408
      %v888 = vunpack.c.l.b16 %v409
      %v889 = vunpack.c.l.b16 %v410
      %v890 = vpack.c.b16 %v747, %v746
      %v891 = vpack.c.b16 %v749, %v748
      %v892 = vpack.c.b16 %v751, %v750
      %v893 = vpack.c.b16 %v753, %v752
      %v894 = vpack.c.b16 %v755, %v754
      %v895 = vpack.c.b16 %v757, %v756
      %v896 = vpack.c.b16 %v759, %v758
      %v897 = vpack.c.b16 %v761, %v760
      %v898 = vpack.c.b16 %v763, %v762
      %v899 = vpack.c.b16 %v765, %v764
      %v900 = vpack.c.b16 %v767, %v766
      %v901 = vpack.c.b16 %v769, %v768
      %v902 = vpack.c.b16 %v771, %v770
      %v903 = vpack.c.b16 %v773, %v772
      %v904 = vpack.c.b16 %v775, %v774
      %v905 = vpack.c.b16 %v777, %v776
      %v906 = vpack.c.b16 %v779, %v778
      %v907 = vpack.c.b16 %v781, %v780
      %v908 = vpack.c.b16 %v783, %v782
      %v909 = vpack.c.b16 %v785, %v784
      %v910 = vpack.c.b16 %v787, %v786
      %v911 = vpack.c.b16 %v789, %v788
      %v912 = vpack.c.b16 %v791, %v790
      %v913 = vpack.c.b16 %v793, %v792
      %v914 = vpack.c.b16 %v795, %v794
      %v915 = vpack.c.b16 %v797, %v796
      %v916 = vpack.c.b16 %v799, %v798
      %v917 = vpack.c.b16 %v801, %v800
      %v918 = vpack.c.b16 %v803, %v802
      %v919 = vpack.c.b16 %v805, %v804
      %v920 = vpack.c.b16 %v807, %v806
      %v921 = vpack.c.b16 %v809, %v808
      %v922 = vpack.c.b16 %v811, %v810
      %v923 = vpack.c.b16 %v813, %v812
      %v924 = vpack.c.b16 %v815, %v814
      %v925 = vpack.c.b16 %v817, %v816
      %v926 = vpack.c.b16 %v819, %v818
      %v927 = vpack.c.b16 %v821, %v820
      %v928 = vpack.c.b16 %v823, %v822
      %v929 = vpack.c.b16 %v825, %v824
      %v930 = vpack.c.b16 %v827, %v826
      %v931 = vpack.c.b16 %v829, %v828
      %v932 = vpack.c.b16 %v831, %v830
      %v933 = vpack.c.b16 %v833, %v832
      %v934 = vpack.c.b16 %v835, %v834
      %v935 = vpack.c.b16 %v837, %v836
      %v936 = vpack.c.b16 %v839, %v838
      %v937 = vpack.c.b16 %v841, %v840
      %v938 = vpack.c.b16 %v843, %v842
      %v939 = vpack.c.b16 %v845, %v844
      %v940 = vpack.c.b16 %v847, %v846
      %v941 = vpack.c.b16 %v849, %v848
      %v942 = vpack.c.b16 %v851, %v850
      %v943 = vpack.c.b16 %v853, %v852
      %v944 = vpack.c.b16 %v855, %v854
      %v945 = vpack.c.b16 %v857, %v856
      %v946 = vpack.c.b16 %v859, %v858
      %v947 = vpack.c.b16 %v861, %v860
      %v948 = vpack.c.b16 %v863, %v862
      %v949 = vpack.c.b16 %v865, %v864
      %v950 = vpack.c.b16 %v867, %v866
      %v951 = vpack.c.b16 %v869, %v868
      %v952 = vpack.c.b16 %v871, %v870
      %v953 = vpack.c.b16 %v873, %v872
      %v954 = vpack.c.b16 %v875, %v874
      %v955 = vpack.c.b16 %v877, %v876
      %v956 = vpack.c.b16 %v879, %v878
      %v957 = vpack.c.b16 %v881, %v880
      %v958 = vpack.c.b16 %v883, %v882
      %v959 = vpack.c.b16 %v885, %v884
      %v960 = vpack.c.b16 %v887, %v886
      %v961 = vpack.c.b16 %v889, %v888
      %1034 = vmatprep.subr.bf16.mxu0 0
      %1035 = vmatpush1.bf16.msra.mxu0 %v890
      %1036 = vmatprep.subr.bf16.mxu0 0
      %1037 = vmatpush1.bf16.msra.mxu0 %v891
      %1038 = vmatprep.subr.bf16.mxu0 0
      %1039 = vmatpush1.bf16.msra.mxu0 %v892
      %1040 = vmatprep.subr.bf16.mxu0 0
      %1041 = vmatpush1.bf16.msra.mxu0 %v893
      %1042 = vmatprep.subr.bf16.mxu0 0
      %1043 = vmatpush1.bf16.msra.mxu0 %v894
      %1044 = vmatprep.subr.bf16.mxu0 0
      %1045 = vmatpush1.bf16.msra.mxu0 %v895
      %1046 = vmatprep.subr.bf16.mxu0 0
      %1047 = vmatpush1.bf16.msra.mxu0 %v896
      %1048 = vmatprep.subr.bf16.mxu0 0
      %1049 = vmatpush1.bf16.msra.mxu0 %v897
      %1050 = vmatprep.subr.bf16.mxu0 0
      %1051 = vmatpush1.bf16.msra.mxu0 %v898
      %1052 = vmatprep.subr.bf16.mxu0 0
      %1053 = vmatpush1.bf16.msra.mxu0 %v899
      %1054 = vmatprep.subr.bf16.mxu0 0
      %1055 = vmatpush1.bf16.msra.mxu0 %v900
      %1056 = vmatprep.subr.bf16.mxu0 0
      %1057 = vmatpush1.bf16.msra.mxu0 %v901
      %1058 = vmatprep.subr.bf16.mxu0 0
      %1059 = vmatpush1.bf16.msra.mxu0 %v902
      %1060 = vmatprep.subr.bf16.mxu0 0
      %1061 = vmatpush1.bf16.msra.mxu0 %v903
      %1062 = vmatprep.subr.bf16.mxu0 0
      %1063 = vmatpush1.bf16.msra.mxu0 %v904
      %1064 = vmatprep.subr.bf16.mxu0 0
      %1065 = vmatpush1.bf16.msra.mxu0 %v905
      %1066 = vmatprep.mubr.bf16.mxu0 %v531
      %1067 = vmatmul.mubr.bf16.gmra.mrb[0].mxu0 %v530
      %v1068 = vpop.f32.mrb[0].mxu0
      %v1069 = vadd.f32 %v416, %v1068
      %v1070 = vpop.f32.mrb[0].mxu0
      %v1071 = vpop.f32.mrb[0].mxu0
      %v1072 = vadd.f32 %v416, %v1071
      %v1073 = vpop.f32.mrb[0].mxu0
      %1074 = vmatprep.mubr.bf16.mxu0 %v540
      %1075 = vmatmul.mubr.bf16.gmra.mrb[0].mxu0 %v539
      %v1076 = vpop.f32.mrb[0].mxu0
      %v1077 = vadd.f32 %v416, %v1076
      %v1078 = vpop.f32.mrb[0].mxu0
      %v1079 = vpop.f32.mrb[0].mxu0
      %v1080 = vadd.f32 %v416, %v1079
      %v1081 = vpop.f32.mrb[0].mxu0
      %1082 = vmatprep.mubr.bf16.mxu0 %v549
      %1083 = vmatmul.mubr.bf16.gmra.mrb[0].mxu0 %v548
      %v1084 = vpop.f32.mrb[0].mxu0
      %v1085 = vadd.f32 %v416, %v1084
      %v1086 = vpop.f32.mrb[0].mxu0
      %v1087 = vpop.f32.mrb[0].mxu0
      %v1088 = vadd.f32 %v416, %v1087
      %v1089 = vpop.f32.mrb[0].mxu0
      %1090 = vmatprep.mubr.bf16.mxu0 %v558
      %1091 = vmatmul.mubr.bf16.gmra.mrb[0].mxu0 %v557
      %v1092 = vpop.f32.mrb[0].mxu0
      %v1093 = vadd.f32 %v416, %v1092
      %v1094 = vpop.f32.mrb[0].mxu0
      %v1095 = vpop.f32.mrb[0].mxu0
      %v1096 = vadd.f32 %v416, %v1095
      %v1097 = vpop.f32.mrb[0].mxu0
      %1098 = vdwg.mxu0
      %1099 = vmatprep.subr.bf16.mxu0 0
      %1100 = vmatpush1.bf16.msra.mxu0 %v906
      %1101 = vmatprep.subr.bf16.mxu0 0
      %1102 = vmatpush1.bf16.msra.mxu0 %v907
      %1103 = vmatprep.subr.bf16.mxu0 0
      %1104 = vmatpush1.bf16.msra.mxu0 %v908
      %1105 = vmatprep.subr.bf16.mxu0 0
      %1106 = vmatpush1.bf16.msra.mxu0 %v909
      %1107 = vmatprep.subr.bf16.mxu0 0
      %1108 = vmatpush1.bf16.msra.mxu0 %v910
      %1109 = vmatprep.subr.bf16.mxu0 0
      %1110 = vmatpush1.bf16.msra.mxu0 %v911
      %1111 = vmatprep.subr.bf16.mxu0 0
      %1112 = vmatpush1.bf16.msra.mxu0 %v912
      %1113 = vmatprep.subr.bf16.mxu0 0
      %1114 = vmatpush1.bf16.msra.mxu0 %v913
      %1115 = vmatprep.subr.bf16.mxu0 0
      %1116 = vmatpush1.bf16.msra.mxu0 %v914
      %1117 = vmatprep.subr.bf16.mxu0 0
      %1118 = vmatpush1.bf16.msra.mxu0 %v915
      %1119 = vmatprep.subr.bf16.mxu0 0
      %1120 = vmatpush1.bf16.msra.mxu0 %v916
      %1121 = vmatprep.subr.bf16.mxu0 0
      %1122 = vmatpush1.bf16.msra.mxu0 %v917
      %1123 = vmatprep.subr.bf16.mxu0 0
      %1124 = vmatpush1.bf16.msra.mxu0 %v918
      %1125 = vmatprep.subr.bf16.mxu0 0
      %1126 = vmatpush1.bf16.msra.mxu0 %v919
      %1127 = vmatprep.subr.bf16.mxu0 0
      %1128 = vmatpush1.bf16.msra.mxu0 %v920
      %1129 = vmatprep.subr.bf16.mxu0 0
      %1130 = vmatpush1.bf16.msra.mxu0 %v921
      %1131 = vmatprep.mubr.bf16.mxu0 %v533
      %1132 = vmatmul.mubr.bf16.gmra.mrb[0].mxu0 %v532
      %v1133 = vpop.f32.mrb[0].mxu0
      %v1134 = vadd.f32 %v1069, %v1133
      %v1135 = vpop.f32.mrb[0].mxu0
      %v1136 = vpop.f32.mrb[0].mxu0
      %v1137 = vadd.f32 %v1072, %v1136
      %v1138 = vpop.f32.mrb[0].mxu0
      %1139 = vmatprep.mubr.bf16.mxu0 %v542
      %1140 = vmatmul.mubr.bf16.gmra.mrb[0].mxu0 %v541
      %v1141 = vpop.f32.mrb[0].mxu0
      %v1142 = vadd.f32 %v1077, %v1141
      %v1143 = vpop.f32.mrb[0].mxu0
      %v1144 = vpop.f32.mrb[0].mxu0
      %v1145 = vadd.f32 %v1080, %v1144
      %v1146 = vpop.f32.mrb[0].mxu0
      %1147 = vmatprep.mubr.bf16.mxu0 %v551
      %1148 = vmatmul.mubr.bf16.gmra.mrb[0].mxu0 %v550
      %v1149 = vpop.f32.mrb[0].mxu0
      %v1150 = vadd.f32 %v1085, %v1149
      %v1151 = vpop.f32.mrb[0].mxu0
      %v1152 = vpop.f32.mrb[0].mxu0
      %v1153 = vadd.f32 %v1088, %v1152
      %v1154 = vpop.f32.mrb[0].mxu0
      %1155 = vmatprep.mubr.bf16.mxu0 %v560
      %1156 = vmatmul.mubr.bf16.gmra.mrb[0].mxu0 %v559
      %v1157 = vpop.f32.mrb[0].mxu0
      %v1158 = vadd.f32 %v1093, %v1157
      %v1159 = vpop.f32.mrb[0].mxu0
      %v1160 = vpop.f32.mrb[0].mxu0
      %v1161 = vadd.f32 %v1096, %v1160
      %v1162 = vpop.f32.mrb[0].mxu0
      %1163 = vdwg.mxu0
      %1164 = vmatprep.subr.bf16.mxu0 0
      %1165 = vmatpush1.bf16.msra.mxu0 %v922
      %1166 = vmatprep.subr.bf16.mxu0 0
      %1167 = vmatpush1.bf16.msra.mxu0 %v923
      %1168 = vmatprep.subr.bf16.mxu0 0
      %1169 = vmatpush1.bf16.msra.mxu0 %v924
      %1170 = vmatprep.subr.bf16.mxu0 0
      %1171 = vmatpush1.bf16.msra.mxu0 %v925
      %1172 = vmatprep.subr.bf16.mxu0 0
      %1173 = vmatpush1.bf16.msra.mxu0 %v926
      %1174 = vmatprep.subr.bf16.mxu0 0
      %1175 = vmatpush1.bf16.msra.mxu0 %v927
      %1176 = vmatprep.subr.bf16.mxu0 0
      %1177 = vmatpush1.bf16.msra.mxu0 %v928
      %1178 = vmatprep.subr.bf16.mxu0 0
      %1179 = vmatpush1.bf16.msra.mxu0 %v929
      %1180 = vmatprep.subr.bf16.mxu0 0
      %1181 = vmatpush1.bf16.msra.mxu0 %v930
      %1182 = vmatprep.subr.bf16.mxu0 0
      %1183 = vmatpush1.bf16.msra.mxu0 %v931
      %1184 = vmatprep.subr.bf16.mxu0 0
      %1185 = vmatpush1.bf16.msra.mxu0 %v932
      %1186 = vmatprep.subr.bf16.mxu0 0
      %1187 = vmatpush1.bf16.msra.mxu0 %v933
      %1188 = vmatprep.subr.bf16.mxu0 0
      %1189 = vmatpush1.bf16.msra.mxu0 %v934
      %1190 = vmatprep.subr.bf16.mxu0 0
      %1191 = vmatpush1.bf16.msra.mxu0 %v935
      %1192 = vmatprep.subr.bf16.mxu0 0
      %1193 = vmatpush1.bf16.msra.mxu0 %v936
      %1194 = vmatprep.subr.bf16.mxu0 0
      %1195 = vmatpush1.bf16.msra.mxu0 %v937
      %1196 = vmatprep.mubr.bf16.mxu0 %v535
      %1197 = vmatmul.mubr.bf16.gmra.mrb[0].mxu0 %v534
      %v1198 = vpop.f32.mrb[0].mxu0
      %v1199 = vadd.f32 %v1134, %v1198
      %v1200 = vpop.f32.mrb[0].mxu0
      %v1201 = vpop.f32.mrb[0].mxu0
      %v1202 = vadd.f32 %v1137, %v1201
      %v1203 = vpop.f32.mrb[0].mxu0
      %1204 = vmatprep.mubr.bf16.mxu0 %v544
      %1205 = vmatmul.mubr.bf16.gmra.mrb[0].mxu0 %v543
      %v1206 = vpop.f32.mrb[0].mxu0
      %v1207 = vadd.f32 %v1142, %v1206
      %v1208 = vpop.f32.mrb[0].mxu0
      %v1209 = vpop.f32.mrb[0].mxu0
      %v1210 = vadd.f32 %v1145, %v1209
      %v1211 = vpop.f32.mrb[0].mxu0
      %1212 = vmatprep.mubr.bf16.mxu0 %v553
      %1213 = vmatmul.mubr.bf16.gmra.mrb[0].mxu0 %v552
      %v1214 = vpop.f32.mrb[0].mxu0
      %v1215 = vadd.f32 %v1150, %v1214
      %v1216 = vpop.f32.mrb[0].mxu0
      %v1217 = vpop.f32.mrb[0].mxu0
      %v1218 = vadd.f32 %v1153, %v1217
      %v1219 = vpop.f32.mrb[0].mxu0
      %1220 = vmatprep.mubr.bf16.mxu0 %v562
      %1221 = vmatmul.mubr.bf16.gmra.mrb[0].mxu0 %v561
      %v1222 = vpop.f32.mrb[0].mxu0
      %v1223 = vadd.f32 %v1158, %v1222
      %v1224 = vpop.f32.mrb[0].mxu0
      %v1225 = vpop.f32.mrb[0].mxu0
      %v1226 = vadd.f32 %v1161, %v1225
      %v1227 = vpop.f32.mrb[0].mxu0
      %1228 = vdwg.mxu0
      %1229 = vmatprep.subr.bf16.mxu0 0
      %1230 = vmatpush1.bf16.msra.mxu0 %v938
      %1231 = vmatprep.subr.bf16.mxu0 0
      %1232 = vmatpush1.bf16.msra.mxu0 %v939
      %1233 = vmatprep.subr.bf16.mxu0 0
      %1234 = vmatpush1.bf16.msra.mxu0 %v940
      %1235 = vmatprep.subr.bf16.mxu0 0
      %1236 = vmatpush1.bf16.msra.mxu0 %v941
      %1237 = vmatprep.subr.bf16.mxu0 0
      %1238 = vmatpush1.bf16.msra.mxu0 %v942
      %1239 = vmatprep.subr.bf16.mxu0 0
      %1240 = vmatpush1.bf16.msra.mxu0 %v943
      %1241 = vmatprep.subr.bf16.mxu0 0
      %1242 = vmatpush1.bf16.msra.mxu0 %v944
      %1243 = vmatprep.subr.bf16.mxu0 0
      %1244 = vmatpush1.bf16.msra.mxu0 %v945
      %1245 = vmatprep.subr.bf16.mxu0 0
      %1246 = vmatpush1.bf16.msra.mxu0 %v946
      %1247 = vmatprep.subr.bf16.mxu0 0
      %1248 = vmatpush1.bf16.msra.mxu0 %v947
      %1249 = vmatprep.subr.bf16.mxu0 0
      %1250 = vmatpush1.bf16.msra.mxu0 %v948
      %1251 = vmatprep.subr.bf16.mxu0 0
      %1252 = vmatpush1.bf16.msra.mxu0 %v949
      %1253 = vmatprep.subr.bf16.mxu0 0
      %1254 = vmatpush1.bf16.msra.mxu0 %v950
      %1255 = vmatprep.subr.bf16.mxu0 0
      %1256 = vmatpush1.bf16.msra.mxu0 %v951
      %1257 = vmatprep.subr.bf16.mxu0 0
      %1258 = vmatpush1.bf16.msra.mxu0 %v952
      %1259 = vmatprep.subr.bf16.mxu0 0
      %1260 = vmatpush1.bf16.msra.mxu0 %v953
      %1261 = vmatprep.mubr.bf16.mxu0 %v537
      %1262 = vmatmul.mubr.bf16.gmra.mrb[0].mxu0 %v536
      %v1263 = vpop.f32.mrb[0].mxu0
      %v1264 = vadd.f32 %v1199, %v1263
      %v1265 = vpop.f32.mrb[0].mxu0
      %v1266 = vpop.f32.mrb[0].mxu0
      %v1267 = vadd.f32 %v1202, %v1266
      %v1268 = vpop.f32.mrb[0].mxu0
      %1269 = vmatprep.mubr.bf16.mxu0 %v546
      %1270 = vmatmul.mubr.bf16.gmra.mrb[0].mxu0 %v545
      %v1271 = vpop.f32.mrb[0].mxu0
      %v1272 = vadd.f32 %v1207, %v1271
      %v1273 = vpop.f32.mrb[0].mxu0
      %v1274 = vpop.f32.mrb[0].mxu0
      %v1275 = vadd.f32 %v1210, %v1274
      %v1276 = vpop.f32.mrb[0].mxu0
      %1277 = vmatprep.mubr.bf16.mxu0 %v555
      %1278 = vmatmul.mubr.bf16.gmra.mrb[0].mxu0 %v554
      %v1279 = vpop.f32.mrb[0].mxu0
      %v1280 = vadd.f32 %v1215, %v1279
      %v1281 = vpop.f32.mrb[0].mxu0
      %v1282 = vpop.f32.mrb[0].mxu0
      %v1283 = vadd.f32 %v1218, %v1282
      %v1284 = vpop.f32.mrb[0].mxu0
      %1285 = vmatprep.mubr.bf16.mxu0 %v564
      %1286 = vmatmul.mubr.bf16.gmra.mrb[0].mxu0 %v563
      %v1287 = vpop.f32.mrb[0].mxu0
      %v1288 = vadd.f32 %v1223, %v1287
      %v1289 = vpop.f32.mrb[0].mxu0
      %v1290 = vpop.f32.mrb[0].mxu0
      %v1291 = vadd.f32 %v1226, %v1290
      %v1292 = vpop.f32.mrb[0].mxu0
      %1293 = vdwg.mxu0
      %1294 = vmatprep.subr.bf16.mxu0 0
      %1295 = vmatpush1.bf16.msra.mxu0 %v954
      %1296 = vmatprep.subr.bf16.mxu0 0
      %1297 = vmatpush1.bf16.msra.mxu0 %v955
      %1298 = vmatprep.subr.bf16.mxu0 0
      %1299 = vmatpush1.bf16.msra.mxu0 %v956
      %1300 = vmatprep.subr.bf16.mxu0 0
      %1301 = vmatpush1.bf16.msra.mxu0 %v957
      %1302 = vmatprep.subr.bf16.mxu0 0
      %1303 = vmatpush1.bf16.msra.mxu0 %v958
      %1304 = vmatprep.subr.bf16.mxu0 0
      %1305 = vmatpush1.bf16.msra.mxu0 %v959
      %1306 = vmatprep.subr.bf16.mxu0 0
      %1307 = vmatpush1.bf16.msra.mxu0 %v960
      %1308 = vmatprep.subr.bf16.mxu0 0
      %1309 = vmatpush1.bf16.msra.mxu0 %v961
      %1310 = vmatprep.subr.bf16.mxu0 0
      %1311 = vmatpush1.bf16.msra.mxu0 0
      %1312 = vmatprep.subr.bf16.mxu0 0
      %1313 = vmatpush1.bf16.msra.mxu0 0
      %1314 = vmatprep.subr.bf16.mxu0 0
      %1315 = vmatpush1.bf16.msra.mxu0 0
      %1316 = vmatprep.subr.bf16.mxu0 0
      %1317 = vmatpush1.bf16.msra.mxu0 0
      %1318 = vmatprep.subr.bf16.mxu0 0
      %1319 = vmatpush1.bf16.msra.mxu0 0
      %1320 = vmatprep.subr.bf16.mxu0 0
      %1321 = vmatpush1.bf16.msra.mxu0 0
      %1322 = vmatprep.subr.bf16.mxu0 0
      %1323 = vmatpush1.bf16.msra.mxu0 0
      %1324 = vmatprep.subr.bf16.mxu0 0
      %1325 = vmatpush1.bf16.msra.mxu0 0
      %1326 = vmatprep.mubr.bf16.mxu0 0
      %1327 = vmatmul.mubr.bf16.gmra.mrb[0].mxu0 %v538
      %v1328 = vpop.f32.mrb[0].mxu0
      %v1329 = vadd.f32 %v1264, %v1328
      %v1330 = vpop.f32.mrb[0].mxu0
      %v1331 = vpop.f32.mrb[0].mxu0
      %v1332 = vadd.f32 %v1267, %v1331
      %v1333 = vpop.f32.mrb[0].mxu0
      %1334 = vmatprep.mubr.bf16.mxu0 0
      %1335 = vmatmul.mubr.bf16.gmra.mrb[0].mxu0 %v547
      %v1336 = vpop.f32.mrb[0].mxu0
      %v1337 = vadd.f32 %v1272, %v1336
      %v1338 = vpop.f32.mrb[0].mxu0
      %v1339 = vpop.f32.mrb[0].mxu0
      %v1340 = vadd.f32 %v1275, %v1339
      %v1341 = vpop.f32.mrb[0].mxu0
      %1342 = vmatprep.mubr.bf16.mxu0 0
      %1343 = vmatmul.mubr.bf16.gmra.mrb[0].mxu0 %v556
      %v1344 = vpop.f32.mrb[0].mxu0
      %v1345 = vadd.f32 %v1280, %v1344
      %v1346 = vpop.f32.mrb[0].mxu0
      %v1347 = vpop.f32.mrb[0].mxu0
      %v1348 = vadd.f32 %v1283, %v1347
      %v1349 = vpop.f32.mrb[0].mxu0
      %1350 = vmatprep.mubr.bf16.mxu0 0
      %1351 = vmatmul.mubr.bf16.gmra.mrb[0].mxu0 %v565
      %v1352 = vpop.f32.mrb[0].mxu0
      %v1353 = vadd.f32 %v1288, %v1352
      %v1354 = vpop.f32.mrb[0].mxu0
      %v1355 = vpop.f32.mrb[0].mxu0
      %v1356 = vadd.f32 %v1291, %v1355
      %v1357 = vpop.f32.mrb[0].mxu0
      %1358 = vdwg.mxu0
      %v1359 = vld [vmem:[%s218] sm:$0xf]
      %v1360 = vld [vmem:[%s218 + $0x4] sm:$0xf]
      %v1361 = vld [vmem:[%s218 + $0x8] sm:$0xf]
      %v1362 = vld [vmem:[%s218 + $0xc] sm:$0xf]
      %v1363 = vld [vmem:[%s218 + $0x10] sm:$0xf]
      %v1364 = vld [vmem:[%s218 + $0x14] sm:$0xf]
      %v1365 = vld [vmem:[%s218 + $0x18] sm:$0xf]
      %v1366 = vld [vmem:[%s218 + $0x1c] sm:$0xf]
      %v1367 = vunpack.c.l.bf16 %v1359
      %v1368 = vunpack.c.l.bf16 %v1360
      %v1369 = vunpack.c.l.bf16 %v1361
      %v1370 = vunpack.c.l.bf16 %v1362
      %v1371 = vunpack.c.l.bf16 %v1363
      %v1372 = vunpack.c.l.bf16 %v1364
      %v1373 = vunpack.c.l.bf16 %v1365
      %v1374 = vunpack.c.l.bf16 %v1366
      %v1375 = vadd.f32 %v1329, %v1367
      %v1376 = vadd.f32 %v1332, %v1368
      %v1377 = vadd.f32 %v1337, %v1369
      %v1378 = vadd.f32 %v1340, %v1370
      %v1379 = vadd.f32 %v1345, %v1371
      %v1380 = vadd.f32 %v1348, %v1372
      %v1381 = vadd.f32 %v1353, %v1373
      %v1382 = vadd.f32 %v1356, %v1374
      %v1383 = vmax.f32 %v1375, 0.0
      %v1384 = vmax.f32 %v1376, 0.0
      %v1385 = vmax.f32 %v1377, 0.0
      %v1386 = vmax.f32 %v1378, 0.0
      %v1387 = vmax.f32 %v1379, 0.0
      %v1388 = vmax.f32 %v1380, 0.0
      %v1389 = vmax.f32 %v1381, 0.0
      %v1390 = vmax.f32 %v1382, 0.0
      %1391 = vst [vmem:[%s224] sm:$0xff] %v1383
      %1392 = vst [vmem:[%s224 + $0x8] sm:$0xff] %v1384
      %1393 = vst [vmem:[%s224 + $0x10] sm:$0xff] %v1385
      %1394 = vst [vmem:[%s224 + $0x18] sm:$0xff] %v1386
      %1395 = vst [vmem:[%s224 + $0x20] sm:$0xff] %v1387
      %1396 = vst [vmem:[%s224 + $0x28] sm:$0xff] %v1388
      %1397 = vst [vmem:[%s224 + $0x30] sm:$0xff] %v1389
      %1398 = vst [vmem:[%s224 + $0x38] sm:$0xff] %v1390
      %s1399 = smul.u32 8, %s15
      %p1400 = scmp.lt.s32.totalorder %s1399, 15
      %s1401 = scalar_select %p1400, %s1399, 15
      %s1402 = smul.addr %s1401, 8
      %s1403 = scalar_lea.vmem %s4, %s1402
      // Predicated region
      $region37: #{residual_forward.3} parent=35 // pred_check
        %p1404 = pneg %p127
      $region38: #{residual_forward.3} parent=35 // pred_check_branch
        %1406 = sbr.rel (%p1404) target = $region40
      $region39: #{residual_forward.3} parent=35 // pred_region
        %s1407 = smul.u32 8, %s15
      $region40: #{residual_forward.3} parent=35 // pred_fallthru
        _
    $region36: #{residual_forward.3} parent=5 // pred_fallthru
      _
    %p1408 = scmp.le.s32.totalorder 2, %s10
    // Predicated region
    $region41: #{residual_forward.3} parent=5 // pred_check
      %p1409 = pneg %p1408
    $region42: #{residual_forward.3} parent=5 // pred_check_branch
      %1411 = sbr.rel (%p1409) target = $region44
    $region43: #{residual_forward.3} parent=5 // pred_region
      %s1412 = ssub.s32 %s10, 2
      // Predicated region
      $region45: #{residual_forward.3} parent=43 // pred_check
        %p1413 = pneg %p133
      $region46: #{residual_forward.3} parent=43 // pred_check_branch
        %1415 = sbr.rel (%p1413) target = $region48
      $region47: #{residual_forward.3} parent=43 // pred_region
        %s1416 = smul.u32 8, %s16
        %p1417 = scmp.lt.s32.totalorder %s1416, 15
        %s1418 = scalar_select %p1417, %s1416, 15
        %s1419 = smul.addr %s1418, 8
        %s1420 = scalar_lea.vmem %s4, %s1419
      $region48: #{residual_forward.3} parent=43 // pred_fallthru
        _
    $region44: #{residual_forward.3} parent=5 // pred_fallthru
      _
  $region6: #{residual_forward.3} parent=0 // loop_footer
    %s14 = sadd.s32 1, %s10
  $region7: #{residual_forward.3} parent=0 // loop_footer_branch
    %9 = sbr.rel target = $region3
  $region8: #{residual_forward.3} parent=0 // loop_exit
    _

</llo_original>
